<compile_context>
chip_gen: v6e
topology: v6e:2x2x1
jax: 0.10.0
libtpu: 0.0.40
codegen_flags: <defaults>
</compile_context>

<pallas_src>
import functools

import jax
import jax.numpy as jnp
from jax import lax
from jax.experimental import pallas as pl
from jax.experimental.pallas import tpu as pltpu


# Fixed architecture: (Cin, Cout) of the four circular 3x3 convs.
_CONV3X3 = ((8, 16), (16, 8), (8, 4), (4, 1))
_MAX_COUT = 16
_MAX_K = 9 * 16  # 144


def forward_kernel(x_ref, w_ref, b_ref, o_ref, *, row_w):
    """Processes one image per grid step.

    x_ref: (1, 1, HW)    f32   flattened input image (C == 1)
    w_ref: (4, 16, 144)  bf16  packed im2col weights; layer l lives in
                               w_ref[l, :Cout_l, :9*Cin_l]
    b_ref: (16, 8)       f32   col0 conv0 weight, col1 conv0 bias,
                               cols 2..5 conv1..conv4 biases,
                               col6 rows 0..2 PReLU alphas
    o_ref: (1, 1, HW)    f32
    """
    hw = x_ref.shape[-1]
    x = x_ref[0]                                    # (1, HW) f32
    b_all = b_ref[...]                              # (16, 8) f32

    # Column-within-row index, used to fix the wrap column of W-shifts.
    col = lax.broadcasted_iota(jnp.int32, (1, hw), 1)
    if (row_w & (row_w - 1)) == 0:
        w_pos = col & (row_w - 1)
    else:
        w_pos = col % row_w
    w_first = w_pos == 0
    w_last = w_pos == row_w - 1

    def roll(a, s):
        # Flat circular roll along the lane (spatial) axis.
        return jnp.roll(a, s, axis=1)

    def conv3x3(a, layer, cin, cout):
        """Circular 3x3 conv as one im2col matmul.  a: (cin, HW) f32."""
        taps = []
        for s_h in (1, 0, -1):                      # dy = 0, 1, 2
            r = a if s_h == 0 else roll(a, s_h * row_w)
            # dx = 0: column (w-1) mod W  -> flat roll +1, fix column w == 0
            t0 = jnp.where(w_first, roll(r, -(row_w - 1)), roll(r, 1))
            # dx = 2: column (w+1) mod W  -> flat roll -1, fix column w == W-1
            t2 = jnp.where(w_last, roll(r, row_w - 1), roll(r, -1))
            taps += [t0, r, t2]                     # dx = 0, 1, 2
        rhs = jnp.concatenate(taps, axis=0).astype(jnp.bfloat16)   # (9*cin, HW)
        w = w_ref[layer][:cout, :9 * cin]                          # (cout, 9*cin) bf16
        acc = jnp.dot(w, rhs, preferred_element_type=jnp.float32)  # (cout, HW) f32
        return acc + b_all[:cout, 2 + layer:3 + layer]

    def prelu(v, alpha):                            # alpha: (1, 1) f32
        return jnp.where(v >= 0.0, v, alpha * v)

    # conv0: 1x1 conv (1 -> 8) + ReLU.  Pure f32 broadcast on the VPU.
    w0 = b_all[:8, 0:1]
    b0 = b_all[:8, 1:2]
    h = jnp.maximum(x * w0 + b0, 0.0)               # (8, HW)

    for i, (cin, cout) in enumerate(_CONV3X3):
        h = conv3x3(h, i, cin, cout)
        if i < 3:
            h = prelu(h, b_all[i:i + 1, 6:7])       # conv1..conv3 + PReLU

    # sigmoid via EUP exp + EUP approximate reciprocal; h is (1, HW).
    o_ref[0] = pl.reciprocal(1.0 + jnp.exp(-h), approx=True).astype(o_ref.dtype)


def init_params(key):
    """PyTorch-style uniform(-1/sqrt(fan_in), +1/sqrt(fan_in)) init."""
    ks = jax.random.split(key, 10)

    def u(k, shape, fan_in):
        b = 1.0 / (fan_in ** 0.5)
        return jax.random.uniform(k, shape, jnp.float32, -b, b)

    return {
        "w0": u(ks[0], (8,), 1.0),             # conv0 (1x1, 1 -> 8)
        "b0": u(ks[1], (8,), 1.0),
        "k1": u(ks[2], (3, 3, 8, 16), 72.0),   # HWIO
        "b1": u(ks[3], (16,), 72.0),
        "k2": u(ks[4], (3, 3, 16, 8), 144.0),
        "b2": u(ks[5], (8,), 144.0),
        "k3": u(ks[6], (3, 3, 8, 4), 72.0),
        "b3": u(ks[7], (4,), 72.0),
        "k4": u(ks[8], (3, 3, 4, 1), 36.0),
        "b4": u(ks[9], (1,), 36.0),
        "alphas": jnp.full((3,), 0.25, jnp.float32),
    }


def pack_params(params):
    """Fold 3x3 kernels to (Cout, 9*Cin) and pack everything into 2 arrays."""
    def fold(k_hwio):                           # (3,3,cin,cout) -> (cout, 9*cin)
        kh, kw, cin, cout = k_hwio.shape
        return k_hwio.reshape(kh * kw * cin, cout).T

    w_pack = jnp.zeros((len(_CONV3X3), _MAX_COUT, _MAX_K), jnp.float32)
    for i, name in enumerate(("k1", "k2", "k3", "k4")):
        wf = fold(params[name])
        w_pack = w_pack.at[i, :wf.shape[0], :wf.shape[1]].set(wf)
    w_pack = w_pack.astype(jnp.bfloat16)        # bf16 MXU operands, f32 accum

    b_pack = jnp.zeros((_MAX_COUT, 8), jnp.float32)
    b_pack = b_pack.at[:8, 0].set(params["w0"])
    b_pack = b_pack.at[:8, 1].set(params["b0"])
    for i, name in enumerate(("b1", "b2", "b3", "b4")):
        b = params[name]
        b_pack = b_pack.at[:b.shape[0], 2 + i].set(b)
    b_pack = b_pack.at[:3, 6].set(params["alphas"])
    return w_pack, b_pack


@jax.jit
def relaxed_forward_net(x_nchw, packed):
    """Forward pass.  x_nchw: (N, 1, H, W) f32 -> (N, 1, H, W) f32."""
    w_pack, b_pack = packed
    n, c, h, w = x_nchw.shape
    if c != 1:
        raise ValueError("RelaxedForwardNet expects a single input channel")
    hw = h * w
    x = x_nchw.reshape(n, 1, hw).astype(jnp.float32)   # lane-dense input

    out = pl.pallas_call(
        functools.partial(forward_kernel, row_w=w),
        out_shape=jax.ShapeDtypeStruct((n, 1, hw), jnp.float32),
        grid=(n,),
        in_specs=[
            pl.BlockSpec((1, 1, hw), lambda i: (i, 0, 0)),
            pl.BlockSpec(w_pack.shape, lambda i: (0, 0, 0)),
            pl.BlockSpec(b_pack.shape, lambda i: (0, 0)),
        ],
        out_specs=pl.BlockSpec((1, 1, hw), lambda i: (i, 0, 0)),
        compiler_params=pltpu.CompilerParams(
            dimension_semantics=("parallel",)),
    )(x, w_pack, b_pack)
    return out.reshape(n, 1, h, w)


# ---------------- pure-JAX references (correctness check only) ---------------
def _circ_conv3x3_ref(x_nhwc, k_hwio, b, *, bf16_operands):
    if bf16_operands:
        x_nhwc = x_nhwc.astype(jnp.bfloat16).astype(jnp.float32)
        k_hwio = k_hwio.astype(jnp.bfloat16).astype(jnp.float32)
    xp = jnp.pad(x_nhwc, ((0, 0), (1, 1), (1, 1), (0, 0)), mode="wrap")
    y = lax.conv_general_dilated(
        xp, k_hwio, window_strides=(1, 1), padding="VALID",
        dimension_numbers=("NHWC", "HWIO", "NHWC"),
        precision=lax.Precision.HIGHEST)
    return y + b.reshape(1, 1, 1, -1)


def reference_forward(x_nchw, p, *, bf16_operands=False):
    x = jnp.transpose(x_nchw, (0, 2, 3, 1))            # NHWC, C == 1
    h0 = jnp.maximum(
        x * p["w0"].reshape(1, 1, 1, -1) + p["b0"].reshape(1, 1, 1, -1), 0.0)
    prelu = lambda v, a: jnp.where(v >= 0.0, v, a * v)
    al = p["alphas"]
    h1 = prelu(_circ_conv3x3_ref(h0, p["k1"], p["b1"], bf16_operands=bf16_operands), al[0])
    h2 = prelu(_circ_conv3x3_ref(h1, p["k2"], p["b2"], bf16_operands=bf16_operands), al[1])
    h3 = prelu(_circ_conv3x3_ref(h2, p["k3"], p["b3"], bf16_operands=bf16_operands), al[2])
    h4 = jax.nn.sigmoid(_circ_conv3x3_ref(h3, p["k4"], p["b4"], bf16_operands=bf16_operands))
    return jnp.transpose(h4, (0, 3, 1, 2))


if __name__ == "__main__":
    key = jax.random.PRNGKey(0)
    k_param, k_x = jax.random.split(key)

    params = init_params(k_param)
    packed = pack_params(params)

    # Module expects NCHW input with 1 input channel.
    x = jax.random.normal(k_x, (2, 1, 16, 16), jnp.float32)

    out = jax.block_until_ready(relaxed_forward_net(x, packed))
    assert out.shape == (2, 1, 16, 16), out.shape

    # Reference with the kernel's matmul precision (bf16 operands, f32 accum):
    # differences are only summation order + the approximate reciprocal.
    ref_matched = reference_forward(x, params, bf16_operands=True)
    err_matched = float(jnp.max(jnp.abs(out - ref_matched)))
    assert err_matched < 1e-2, f"mismatch vs matched-precision reference: {err_matched}"

    # Full-f32 reference (exact module semantics), loose tol for bf16 matmuls.
    ref_f32 = reference_forward(x, params, bf16_operands=False)
    err_f32 = float(jnp.max(jnp.abs(out - ref_f32)))
    assert err_f32 < 3e-2, f"mismatch vs f32 reference: {err_f32}"

    print("KERNEL_OK")
</pallas_src>

<mosaic_0001>
module attributes {stable_mosaic.version = 11 : i64} {
  func.func @forward_kernel(%arg0: i32, %arg1: memref<1x1x256xf32, #tpu.memory_space<vmem>>, %arg2: memref<4x16x144xbf16, #tpu.memory_space<vmem>>, %arg3: memref<16x8xf32, #tpu.memory_space<vmem>>, %arg4: memref<1x1x256xf32, #tpu.memory_space<vmem>>) attributes {dimension_semantics = [#tpu.dimension_semantics<parallel>], iteration_bounds = array<i64: 2>, scalar_prefetch = 0 : i64, scratch_operands = 0 : i64, tpu.core_type = #tpu.core_type<tc>, window_params = [{transform_indices = @transform_0, window_bounds = array<i64: 1, 1, 256>}, {pipeline_mode = #tpu.pipeline_mode<synchronous>, transform_indices = @transform_1, window_bounds = array<i64: 4, 16, 144>}, {pipeline_mode = #tpu.pipeline_mode<synchronous>, transform_indices = @transform_2, window_bounds = array<i64: 16, 8>}, {transform_indices = @transform_3, window_bounds = array<i64: 1, 1, 256>}]} {
    %c0 = arith.constant 0 : index
    %c0_0 = arith.constant 0 : index
    %c0_1 = arith.constant 0 : index
    %0 = vector.load %arg1[%c0, %c0_0, %c0_1] : memref<1x1x256xf32, #tpu.memory_space<vmem>>, vector<1x1x256xf32>
    %1 = vector.shape_cast %0 : vector<1x1x256xf32> to vector<1x256xf32>
    %c0_2 = arith.constant 0 : index
    %c0_3 = arith.constant 0 : index
    %2 = vector.load %arg3[%c0_2, %c0_3] : memref<16x8xf32, #tpu.memory_space<vmem>>, vector<16x8xf32>
    %3 = tpu.iota {dimensions = array<i32: 1>} : vector<1x256xi32>
    %c15_i32 = arith.constant 15 : i32
    %4 = vector.broadcast %c15_i32 : i32 to vector<1x256xi32>
    %5 = arith.andi %3, %4 : vector<1x256xi32>
    %c0_i32 = arith.constant 0 : i32
    %6 = vector.broadcast %c0_i32 : i32 to vector<1x256xi32>
    %7 = arith.cmpi eq, %5, %6 : vector<1x256xi32>
    %c15_i32_4 = arith.constant 15 : i32
    %8 = vector.broadcast %c15_i32_4 : i32 to vector<1x256xi32>
    %9 = arith.cmpi eq, %5, %8 : vector<1x256xi32>
    %10 = vector.extract_strided_slice %2 {offsets = [0, 0], sizes = [8, 1], strides = [1, 1]} : vector<16x8xf32> to vector<8x1xf32>
    %11 = vector.extract_strided_slice %2 {offsets = [0, 1], sizes = [8, 1], strides = [1, 1]} : vector<16x8xf32> to vector<8x1xf32>
    %12 = vector.broadcast %1 : vector<1x256xf32> to vector<8x256xf32>
    %13 = vector.broadcast %10 : vector<8x1xf32> to vector<8x256xf32>
    %14 = arith.mulf %12, %13 : vector<8x256xf32>
    %15 = vector.broadcast %11 : vector<8x1xf32> to vector<8x256xf32>
    %16 = arith.addf %14, %15 : vector<8x256xf32>
    %cst = arith.constant 0.000000e+00 : f32
    %17 = vector.broadcast %cst : f32 to vector<8x256xf32>
    %18 = arith.maximumf %16, %17 : vector<8x256xf32>
    %19 = vector.extract_strided_slice %18 {offsets = [0, 240], sizes = [8, 16], strides = [1, 1]} : vector<8x256xf32> to vector<8x16xf32>
    %20 = vector.extract_strided_slice %18 {offsets = [0, 0], sizes = [8, 240], strides = [1, 1]} : vector<8x256xf32> to vector<8x240xf32>
    %21 = tpu.concatenate %19, %20 in 1 : vector<8x16xf32>, vector<8x240xf32> -> vector<8x256xf32>
    %22 = vector.extract_strided_slice %21 {offsets = [0, 15], sizes = [8, 241], strides = [1, 1]} : vector<8x256xf32> to vector<8x241xf32>
    %23 = vector.extract_strided_slice %21 {offsets = [0, 0], sizes = [8, 15], strides = [1, 1]} : vector<8x256xf32> to vector<8x15xf32>
    %24 = tpu.concatenate %22, %23 in 1 : vector<8x241xf32>, vector<8x15xf32> -> vector<8x256xf32>
    %25 = vector.extract_strided_slice %21 {offsets = [0, 255], sizes = [8, 1], strides = [1, 1]} : vector<8x256xf32> to vector<8x1xf32>
    %26 = vector.extract_strided_slice %21 {offsets = [0, 0], sizes = [8, 255], strides = [1, 1]} : vector<8x256xf32> to vector<8x255xf32>
    %27 = tpu.concatenate %25, %26 in 1 : vector<8x1xf32>, vector<8x255xf32> -> vector<8x256xf32>
    %28 = vector.shape_cast %7 : vector<1x256xi1> to vector<1x256xi1>
    %29 = vector.broadcast %28 : vector<1x256xi1> to vector<8x256xi1>
    %30 = arith.select %29, %24, %27 : vector<8x256xi1>, vector<8x256xf32>
    %31 = vector.extract_strided_slice %21 {offsets = [0, 241], sizes = [8, 15], strides = [1, 1]} : vector<8x256xf32> to vector<8x15xf32>
    %32 = vector.extract_strided_slice %21 {offsets = [0, 0], sizes = [8, 241], strides = [1, 1]} : vector<8x256xf32> to vector<8x241xf32>
    %33 = tpu.concatenate %31, %32 in 1 : vector<8x15xf32>, vector<8x241xf32> -> vector<8x256xf32>
    %34 = vector.extract_strided_slice %21 {offsets = [0, 1], sizes = [8, 255], strides = [1, 1]} : vector<8x256xf32> to vector<8x255xf32>
    %35 = vector.extract_strided_slice %21 {offsets = [0, 0], sizes = [8, 1], strides = [1, 1]} : vector<8x256xf32> to vector<8x1xf32>
    %36 = tpu.concatenate %34, %35 in 1 : vector<8x255xf32>, vector<8x1xf32> -> vector<8x256xf32>
    %37 = vector.shape_cast %9 : vector<1x256xi1> to vector<1x256xi1>
    %38 = vector.broadcast %37 : vector<1x256xi1> to vector<8x256xi1>
    %39 = arith.select %38, %33, %36 : vector<8x256xi1>, vector<8x256xf32>
    %40 = vector.extract_strided_slice %18 {offsets = [0, 15], sizes = [8, 241], strides = [1, 1]} : vector<8x256xf32> to vector<8x241xf32>
    %41 = vector.extract_strided_slice %18 {offsets = [0, 0], sizes = [8, 15], strides = [1, 1]} : vector<8x256xf32> to vector<8x15xf32>
    %42 = tpu.concatenate %40, %41 in 1 : vector<8x241xf32>, vector<8x15xf32> -> vector<8x256xf32>
    %43 = vector.extract_strided_slice %18 {offsets = [0, 255], sizes = [8, 1], strides = [1, 1]} : vector<8x256xf32> to vector<8x1xf32>
    %44 = vector.extract_strided_slice %18 {offsets = [0, 0], sizes = [8, 255], strides = [1, 1]} : vector<8x256xf32> to vector<8x255xf32>
    %45 = tpu.concatenate %43, %44 in 1 : vector<8x1xf32>, vector<8x255xf32> -> vector<8x256xf32>
    %46 = vector.shape_cast %7 : vector<1x256xi1> to vector<1x256xi1>
    %47 = vector.broadcast %46 : vector<1x256xi1> to vector<8x256xi1>
    %48 = arith.select %47, %42, %45 : vector<8x256xi1>, vector<8x256xf32>
    %49 = vector.extract_strided_slice %18 {offsets = [0, 241], sizes = [8, 15], strides = [1, 1]} : vector<8x256xf32> to vector<8x15xf32>
    %50 = vector.extract_strided_slice %18 {offsets = [0, 0], sizes = [8, 241], strides = [1, 1]} : vector<8x256xf32> to vector<8x241xf32>
    %51 = tpu.concatenate %49, %50 in 1 : vector<8x15xf32>, vector<8x241xf32> -> vector<8x256xf32>
    %52 = vector.extract_strided_slice %18 {offsets = [0, 1], sizes = [8, 255], strides = [1, 1]} : vector<8x256xf32> to vector<8x255xf32>
    %53 = vector.extract_strided_slice %18 {offsets = [0, 0], sizes = [8, 1], strides = [1, 1]} : vector<8x256xf32> to vector<8x1xf32>
    %54 = tpu.concatenate %52, %53 in 1 : vector<8x255xf32>, vector<8x1xf32> -> vector<8x256xf32>
    %55 = vector.shape_cast %9 : vector<1x256xi1> to vector<1x256xi1>
    %56 = vector.broadcast %55 : vector<1x256xi1> to vector<8x256xi1>
    %57 = arith.select %56, %51, %54 : vector<8x256xi1>, vector<8x256xf32>
    %58 = vector.extract_strided_slice %18 {offsets = [0, 16], sizes = [8, 240], strides = [1, 1]} : vector<8x256xf32> to vector<8x240xf32>
    %59 = vector.extract_strided_slice %18 {offsets = [0, 0], sizes = [8, 16], strides = [1, 1]} : vector<8x256xf32> to vector<8x16xf32>
    %60 = tpu.concatenate %58, %59 in 1 : vector<8x240xf32>, vector<8x16xf32> -> vector<8x256xf32>
    %61 = vector.extract_strided_slice %60 {offsets = [0, 15], sizes = [8, 241], strides = [1, 1]} : vector<8x256xf32> to vector<8x241xf32>
    %62 = vector.extract_strided_slice %60 {offsets = [0, 0], sizes = [8, 15], strides = [1, 1]} : vector<8x256xf32> to vector<8x15xf32>
    %63 = tpu.concatenate %61, %62 in 1 : vector<8x241xf32>, vector<8x15xf32> -> vector<8x256xf32>
    %64 = vector.extract_strided_slice %60 {offsets = [0, 255], sizes = [8, 1], strides = [1, 1]} : vector<8x256xf32> to vector<8x1xf32>
    %65 = vector.extract_strided_slice %60 {offsets = [0, 0], sizes = [8, 255], strides = [1, 1]} : vector<8x256xf32> to vector<8x255xf32>
    %66 = tpu.concatenate %64, %65 in 1 : vector<8x1xf32>, vector<8x255xf32> -> vector<8x256xf32>
    %67 = vector.shape_cast %7 : vector<1x256xi1> to vector<1x256xi1>
    %68 = vector.broadcast %67 : vector<1x256xi1> to vector<8x256xi1>
    %69 = arith.select %68, %63, %66 : vector<8x256xi1>, vector<8x256xf32>
    %70 = vector.extract_strided_slice %60 {offsets = [0, 241], sizes = [8, 15], strides = [1, 1]} : vector<8x256xf32> to vector<8x15xf32>
    %71 = vector.extract_strided_slice %60 {offsets = [0, 0], sizes = [8, 241], strides = [1, 1]} : vector<8x256xf32> to vector<8x241xf32>
    %72 = tpu.concatenate %70, %71 in 1 : vector<8x15xf32>, vector<8x241xf32> -> vector<8x256xf32>
    %73 = vector.extract_strided_slice %60 {offsets = [0, 1], sizes = [8, 255], strides = [1, 1]} : vector<8x256xf32> to vector<8x255xf32>
    %74 = vector.extract_strided_slice %60 {offsets = [0, 0], sizes = [8, 1], strides = [1, 1]} : vector<8x256xf32> to vector<8x1xf32>
    %75 = tpu.concatenate %73, %74 in 1 : vector<8x255xf32>, vector<8x1xf32> -> vector<8x256xf32>
    %76 = vector.shape_cast %9 : vector<1x256xi1> to vector<1x256xi1>
    %77 = vector.broadcast %76 : vector<1x256xi1> to vector<8x256xi1>
    %78 = arith.select %77, %72, %75 : vector<8x256xi1>, vector<8x256xf32>
    %79 = tpu.concatenate %30, %21, %39, %48, %18, %57, %69, %60, %78 in 0 : vector<8x256xf32>, vector<8x256xf32>, vector<8x256xf32>, vector<8x256xf32>, vector<8x256xf32>, vector<8x256xf32>, vector<8x256xf32>, vector<8x256xf32>, vector<8x256xf32> -> vector<72x256xf32>
    %80 = arith.truncf %79 : vector<72x256xf32> to vector<72x256xbf16>
    %c0_5 = arith.constant 0 : index
    %c0_6 = arith.constant 0 : index
    %c0_7 = arith.constant 0 : index
    %81 = vector.load %arg2[%c0_5, %c0_6, %c0_7] : memref<4x16x144xbf16, #tpu.memory_space<vmem>>, vector<1x16x144xbf16>
    %82 = vector.shape_cast %81 : vector<1x16x144xbf16> to vector<16x144xbf16>
    %83 = vector.extract_strided_slice %82 {offsets = [0, 0], sizes = [16, 72], strides = [1, 1]} : vector<16x144xbf16> to vector<16x72xbf16>
    %cst_8 = arith.constant dense<0.000000e+00> : vector<16x256xf32>
    %84 = tpu.matmul %83, %80, %cst_8 {dimension_numbers = #tpu.dot_dimension_numbers<[1], [0], [0], [1], [0, 0, 1, 1], [], []>} : vector<16x72xbf16>, vector<72x256xbf16>, vector<16x256xf32> -> vector<16x256xf32>
    %85 = vector.extract_strided_slice %2 {offsets = [0, 2], sizes = [16, 1], strides = [1, 1]} : vector<16x8xf32> to vector<16x1xf32>
    %86 = vector.broadcast %85 : vector<16x1xf32> to vector<16x256xf32>
    %87 = arith.addf %84, %86 : vector<16x256xf32>
    %88 = vector.extract_strided_slice %2 {offsets = [0, 6], sizes = [1, 1], strides = [1, 1]} : vector<16x8xf32> to vector<1x1xf32>
    %cst_9 = arith.constant 0.000000e+00 : f32
    %89 = vector.broadcast %cst_9 : f32 to vector<16x256xf32>
    %90 = arith.cmpf oge, %87, %89 : vector<16x256xf32>
    %91 = vector.broadcast %88 : vector<1x1xf32> to vector<16x256xf32>
    %92 = arith.mulf %91, %87 : vector<16x256xf32>
    %93 = arith.select %90, %87, %92 : vector<16x256xi1>, vector<16x256xf32>
    %94 = vector.extract_strided_slice %93 {offsets = [0, 240], sizes = [16, 16], strides = [1, 1]} : vector<16x256xf32> to vector<16x16xf32>
    %95 = vector.extract_strided_slice %93 {offsets = [0, 0], sizes = [16, 240], strides = [1, 1]} : vector<16x256xf32> to vector<16x240xf32>
    %96 = tpu.concatenate %94, %95 in 1 : vector<16x16xf32>, vector<16x240xf32> -> vector<16x256xf32>
    %97 = vector.extract_strided_slice %96 {offsets = [0, 15], sizes = [16, 241], strides = [1, 1]} : vector<16x256xf32> to vector<16x241xf32>
    %98 = vector.extract_strided_slice %96 {offsets = [0, 0], sizes = [16, 15], strides = [1, 1]} : vector<16x256xf32> to vector<16x15xf32>
    %99 = tpu.concatenate %97, %98 in 1 : vector<16x241xf32>, vector<16x15xf32> -> vector<16x256xf32>
    %100 = vector.extract_strided_slice %96 {offsets = [0, 255], sizes = [16, 1], strides = [1, 1]} : vector<16x256xf32> to vector<16x1xf32>
    %101 = vector.extract_strided_slice %96 {offsets = [0, 0], sizes = [16, 255], strides = [1, 1]} : vector<16x256xf32> to vector<16x255xf32>
    %102 = tpu.concatenate %100, %101 in 1 : vector<16x1xf32>, vector<16x255xf32> -> vector<16x256xf32>
    %103 = vector.shape_cast %7 : vector<1x256xi1> to vector<1x256xi1>
    %104 = vector.broadcast %103 : vector<1x256xi1> to vector<16x256xi1>
    %105 = arith.select %104, %99, %102 : vector<16x256xi1>, vector<16x256xf32>
    %106 = vector.extract_strided_slice %96 {offsets = [0, 241], sizes = [16, 15], strides = [1, 1]} : vector<16x256xf32> to vector<16x15xf32>
    %107 = vector.extract_strided_slice %96 {offsets = [0, 0], sizes = [16, 241], strides = [1, 1]} : vector<16x256xf32> to vector<16x241xf32>
    %108 = tpu.concatenate %106, %107 in 1 : vector<16x15xf32>, vector<16x241xf32> -> vector<16x256xf32>
    %109 = vector.extract_strided_slice %96 {offsets = [0, 1], sizes = [16, 255], strides = [1, 1]} : vector<16x256xf32> to vector<16x255xf32>
    %110 = vector.extract_strided_slice %96 {offsets = [0, 0], sizes = [16, 1], strides = [1, 1]} : vector<16x256xf32> to vector<16x1xf32>
    %111 = tpu.concatenate %109, %110 in 1 : vector<16x255xf32>, vector<16x1xf32> -> vector<16x256xf32>
    %112 = vector.shape_cast %9 : vector<1x256xi1> to vector<1x256xi1>
    %113 = vector.broadcast %112 : vector<1x256xi1> to vector<16x256xi1>
    %114 = arith.select %113, %108, %111 : vector<16x256xi1>, vector<16x256xf32>
    %115 = vector.extract_strided_slice %93 {offsets = [0, 15], sizes = [16, 241], strides = [1, 1]} : vector<16x256xf32> to vector<16x241xf32>
    %116 = vector.extract_strided_slice %93 {offsets = [0, 0], sizes = [16, 15], strides = [1, 1]} : vector<16x256xf32> to vector<16x15xf32>
    %117 = tpu.concatenate %115, %116 in 1 : vector<16x241xf32>, vector<16x15xf32> -> vector<16x256xf32>
    %118 = vector.extract_strided_slice %93 {offsets = [0, 255], sizes = [16, 1], strides = [1, 1]} : vector<16x256xf32> to vector<16x1xf32>
    %119 = vector.extract_strided_slice %93 {offsets = [0, 0], sizes = [16, 255], strides = [1, 1]} : vector<16x256xf32> to vector<16x255xf32>
    %120 = tpu.concatenate %118, %119 in 1 : vector<16x1xf32>, vector<16x255xf32> -> vector<16x256xf32>
    %121 = vector.shape_cast %7 : vector<1x256xi1> to vector<1x256xi1>
    %122 = vector.broadcast %121 : vector<1x256xi1> to vector<16x256xi1>
    %123 = arith.select %122, %117, %120 : vector<16x256xi1>, vector<16x256xf32>
    %124 = vector.extract_strided_slice %93 {offsets = [0, 241], sizes = [16, 15], strides = [1, 1]} : vector<16x256xf32> to vector<16x15xf32>
    %125 = vector.extract_strided_slice %93 {offsets = [0, 0], sizes = [16, 241], strides = [1, 1]} : vector<16x256xf32> to vector<16x241xf32>
    %126 = tpu.concatenate %124, %125 in 1 : vector<16x15xf32>, vector<16x241xf32> -> vector<16x256xf32>
    %127 = vector.extract_strided_slice %93 {offsets = [0, 1], sizes = [16, 255], strides = [1, 1]} : vector<16x256xf32> to vector<16x255xf32>
    %128 = vector.extract_strided_slice %93 {offsets = [0, 0], sizes = [16, 1], strides = [1, 1]} : vector<16x256xf32> to vector<16x1xf32>
    %129 = tpu.concatenate %127, %128 in 1 : vector<16x255xf32>, vector<16x1xf32> -> vector<16x256xf32>
    %130 = vector.shape_cast %9 : vector<1x256xi1> to vector<1x256xi1>
    %131 = vector.broadcast %130 : vector<1x256xi1> to vector<16x256xi1>
    %132 = arith.select %131, %126, %129 : vector<16x256xi1>, vector<16x256xf32>
    %133 = vector.extract_strided_slice %93 {offsets = [0, 16], sizes = [16, 240], strides = [1, 1]} : vector<16x256xf32> to vector<16x240xf32>
    %134 = vector.extract_strided_slice %93 {offsets = [0, 0], sizes = [16, 16], strides = [1, 1]} : vector<16x256xf32> to vector<16x16xf32>
    %135 = tpu.concatenate %133, %134 in 1 : vector<16x240xf32>, vector<16x16xf32> -> vector<16x256xf32>
    %136 = vector.extract_strided_slice %135 {offsets = [0, 15], sizes = [16, 241], strides = [1, 1]} : vector<16x256xf32> to vector<16x241xf32>
    %137 = vector.extract_strided_slice %135 {offsets = [0, 0], sizes = [16, 15], strides = [1, 1]} : vector<16x256xf32> to vector<16x15xf32>
    %138 = tpu.concatenate %136, %137 in 1 : vector<16x241xf32>, vector<16x15xf32> -> vector<16x256xf32>
    %139 = vector.extract_strided_slice %135 {offsets = [0, 255], sizes = [16, 1], strides = [1, 1]} : vector<16x256xf32> to vector<16x1xf32>
    %140 = vector.extract_strided_slice %135 {offsets = [0, 0], sizes = [16, 255], strides = [1, 1]} : vector<16x256xf32> to vector<16x255xf32>
    %141 = tpu.concatenate %139, %140 in 1 : vector<16x1xf32>, vector<16x255xf32> -> vector<16x256xf32>
    %142 = vector.shape_cast %7 : vector<1x256xi1> to vector<1x256xi1>
    %143 = vector.broadcast %142 : vector<1x256xi1> to vector<16x256xi1>
    %144 = arith.select %143, %138, %141 : vector<16x256xi1>, vector<16x256xf32>
    %145 = vector.extract_strided_slice %135 {offsets = [0, 241], sizes = [16, 15], strides = [1, 1]} : vector<16x256xf32> to vector<16x15xf32>
    %146 = vector.extract_strided_slice %135 {offsets = [0, 0], sizes = [16, 241], strides = [1, 1]} : vector<16x256xf32> to vector<16x241xf32>
    %147 = tpu.concatenate %145, %146 in 1 : vector<16x15xf32>, vector<16x241xf32> -> vector<16x256xf32>
    %148 = vector.extract_strided_slice %135 {offsets = [0, 1], sizes = [16, 255], strides = [1, 1]} : vector<16x256xf32> to vector<16x255xf32>
    %149 = vector.extract_strided_slice %135 {offsets = [0, 0], sizes = [16, 1], strides = [1, 1]} : vector<16x256xf32> to vector<16x1xf32>
    %150 = tpu.concatenate %148, %149 in 1 : vector<16x255xf32>, vector<16x1xf32> -> vector<16x256xf32>
    %151 = vector.shape_cast %9 : vector<1x256xi1> to vector<1x256xi1>
    %152 = vector.broadcast %151 : vector<1x256xi1> to vector<16x256xi1>
    %153 = arith.select %152, %147, %150 : vector<16x256xi1>, vector<16x256xf32>
    %154 = tpu.concatenate %105, %96, %114, %123, %93, %132, %144, %135, %153 in 0 : vector<16x256xf32>, vector<16x256xf32>, vector<16x256xf32>, vector<16x256xf32>, vector<16x256xf32>, vector<16x256xf32>, vector<16x256xf32>, vector<16x256xf32>, vector<16x256xf32> -> vector<144x256xf32>
    %155 = arith.truncf %154 : vector<144x256xf32> to vector<144x256xbf16>
    %c1 = arith.constant 1 : index
    %c0_10 = arith.constant 0 : index
    %c0_11 = arith.constant 0 : index
    %156 = vector.load %arg2[%c1, %c0_10, %c0_11] : memref<4x16x144xbf16, #tpu.memory_space<vmem>>, vector<1x16x144xbf16>
    %157 = vector.shape_cast %156 : vector<1x16x144xbf16> to vector<16x144xbf16>
    %158 = vector.extract_strided_slice %157 {offsets = [0, 0], sizes = [8, 144], strides = [1, 1]} : vector<16x144xbf16> to vector<8x144xbf16>
    %cst_12 = arith.constant dense<0.000000e+00> : vector<8x256xf32>
    %159 = tpu.matmul %158, %155, %cst_12 {dimension_numbers = #tpu.dot_dimension_numbers<[1], [0], [0], [1], [0, 0, 1, 1], [], []>} : vector<8x144xbf16>, vector<144x256xbf16>, vector<8x256xf32> -> vector<8x256xf32>
    %160 = vector.extract_strided_slice %2 {offsets = [0, 3], sizes = [8, 1], strides = [1, 1]} : vector<16x8xf32> to vector<8x1xf32>
    %161 = vector.broadcast %160 : vector<8x1xf32> to vector<8x256xf32>
    %162 = arith.addf %159, %161 : vector<8x256xf32>
    %163 = vector.extract_strided_slice %2 {offsets = [1, 6], sizes = [1, 1], strides = [1, 1]} : vector<16x8xf32> to vector<1x1xf32>
    %cst_13 = arith.constant 0.000000e+00 : f32
    %164 = vector.broadcast %cst_13 : f32 to vector<8x256xf32>
    %165 = arith.cmpf oge, %162, %164 : vector<8x256xf32>
    %166 = vector.broadcast %163 : vector<1x1xf32> to vector<8x256xf32>
    %167 = arith.mulf %166, %162 : vector<8x256xf32>
    %168 = arith.select %165, %162, %167 : vector<8x256xi1>, vector<8x256xf32>
    %169 = vector.extract_strided_slice %168 {offsets = [0, 240], sizes = [8, 16], strides = [1, 1]} : vector<8x256xf32> to vector<8x16xf32>
    %170 = vector.extract_strided_slice %168 {offsets = [0, 0], sizes = [8, 240], strides = [1, 1]} : vector<8x256xf32> to vector<8x240xf32>
    %171 = tpu.concatenate %169, %170 in 1 : vector<8x16xf32>, vector<8x240xf32> -> vector<8x256xf32>
    %172 = vector.extract_strided_slice %171 {offsets = [0, 15], sizes = [8, 241], strides = [1, 1]} : vector<8x256xf32> to vector<8x241xf32>
    %173 = vector.extract_strided_slice %171 {offsets = [0, 0], sizes = [8, 15], strides = [1, 1]} : vector<8x256xf32> to vector<8x15xf32>
    %174 = tpu.concatenate %172, %173 in 1 : vector<8x241xf32>, vector<8x15xf32> -> vector<8x256xf32>
    %175 = vector.extract_strided_slice %171 {offsets = [0, 255], sizes = [8, 1], strides = [1, 1]} : vector<8x256xf32> to vector<8x1xf32>
    %176 = vector.extract_strided_slice %171 {offsets = [0, 0], sizes = [8, 255], strides = [1, 1]} : vector<8x256xf32> to vector<8x255xf32>
    %177 = tpu.concatenate %175, %176 in 1 : vector<8x1xf32>, vector<8x255xf32> -> vector<8x256xf32>
    %178 = vector.shape_cast %7 : vector<1x256xi1> to vector<1x256xi1>
    %179 = vector.broadcast %178 : vector<1x256xi1> to vector<8x256xi1>
    %180 = arith.select %179, %174, %177 : vector<8x256xi1>, vector<8x256xf32>
    %181 = vector.extract_strided_slice %171 {offsets = [0, 241], sizes = [8, 15], strides = [1, 1]} : vector<8x256xf32> to vector<8x15xf32>
    %182 = vector.extract_strided_slice %171 {offsets = [0, 0], sizes = [8, 241], strides = [1, 1]} : vector<8x256xf32> to vector<8x241xf32>
    %183 = tpu.concatenate %181, %182 in 1 : vector<8x15xf32>, vector<8x241xf32> -> vector<8x256xf32>
    %184 = vector.extract_strided_slice %171 {offsets = [0, 1], sizes = [8, 255], strides = [1, 1]} : vector<8x256xf32> to vector<8x255xf32>
    %185 = vector.extract_strided_slice %171 {offsets = [0, 0], sizes = [8, 1], strides = [1, 1]} : vector<8x256xf32> to vector<8x1xf32>
    %186 = tpu.concatenate %184, %185 in 1 : vector<8x255xf32>, vector<8x1xf32> -> vector<8x256xf32>
    %187 = vector.shape_cast %9 : vector<1x256xi1> to vector<1x256xi1>
    %188 = vector.broadcast %187 : vector<1x256xi1> to vector<8x256xi1>
    %189 = arith.select %188, %183, %186 : vector<8x256xi1>, vector<8x256xf32>
    %190 = vector.extract_strided_slice %168 {offsets = [0, 15], sizes = [8, 241], strides = [1, 1]} : vector<8x256xf32> to vector<8x241xf32>
    %191 = vector.extract_strided_slice %168 {offsets = [0, 0], sizes = [8, 15], strides = [1, 1]} : vector<8x256xf32> to vector<8x15xf32>
    %192 = tpu.concatenate %190, %191 in 1 : vector<8x241xf32>, vector<8x15xf32> -> vector<8x256xf32>
    %193 = vector.extract_strided_slice %168 {offsets = [0, 255], sizes = [8, 1], strides = [1, 1]} : vector<8x256xf32> to vector<8x1xf32>
    %194 = vector.extract_strided_slice %168 {offsets = [0, 0], sizes = [8, 255], strides = [1, 1]} : vector<8x256xf32> to vector<8x255xf32>
    %195 = tpu.concatenate %193, %194 in 1 : vector<8x1xf32>, vector<8x255xf32> -> vector<8x256xf32>
    %196 = vector.shape_cast %7 : vector<1x256xi1> to vector<1x256xi1>
    %197 = vector.broadcast %196 : vector<1x256xi1> to vector<8x256xi1>
    %198 = arith.select %197, %192, %195 : vector<8x256xi1>, vector<8x256xf32>
    %199 = vector.extract_strided_slice %168 {offsets = [0, 241], sizes = [8, 15], strides = [1, 1]} : vector<8x256xf32> to vector<8x15xf32>
    %200 = vector.extract_strided_slice %168 {offsets = [0, 0], sizes = [8, 241], strides = [1, 1]} : vector<8x256xf32> to vector<8x241xf32>
    %201 = tpu.concatenate %199, %200 in 1 : vector<8x15xf32>, vector<8x241xf32> -> vector<8x256xf32>
    %202 = vector.extract_strided_slice %168 {offsets = [0, 1], sizes = [8, 255], strides = [1, 1]} : vector<8x256xf32> to vector<8x255xf32>
    %203 = vector.extract_strided_slice %168 {offsets = [0, 0], sizes = [8, 1], strides = [1, 1]} : vector<8x256xf32> to vector<8x1xf32>
    %204 = tpu.concatenate %202, %203 in 1 : vector<8x255xf32>, vector<8x1xf32> -> vector<8x256xf32>
    %205 = vector.shape_cast %9 : vector<1x256xi1> to vector<1x256xi1>
    %206 = vector.broadcast %205 : vector<1x256xi1> to vector<8x256xi1>
    %207 = arith.select %206, %201, %204 : vector<8x256xi1>, vector<8x256xf32>
    %208 = vector.extract_strided_slice %168 {offsets = [0, 16], sizes = [8, 240], strides = [1, 1]} : vector<8x256xf32> to vector<8x240xf32>
    %209 = vector.extract_strided_slice %168 {offsets = [0, 0], sizes = [8, 16], strides = [1, 1]} : vector<8x256xf32> to vector<8x16xf32>
    %210 = tpu.concatenate %208, %209 in 1 : vector<8x240xf32>, vector<8x16xf32> -> vector<8x256xf32>
    %211 = vector.extract_strided_slice %210 {offsets = [0, 15], sizes = [8, 241], strides = [1, 1]} : vector<8x256xf32> to vector<8x241xf32>
    %212 = vector.extract_strided_slice %210 {offsets = [0, 0], sizes = [8, 15], strides = [1, 1]} : vector<8x256xf32> to vector<8x15xf32>
    %213 = tpu.concatenate %211, %212 in 1 : vector<8x241xf32>, vector<8x15xf32> -> vector<8x256xf32>
    %214 = vector.extract_strided_slice %210 {offsets = [0, 255], sizes = [8, 1], strides = [1, 1]} : vector<8x256xf32> to vector<8x1xf32>
    %215 = vector.extract_strided_slice %210 {offsets = [0, 0], sizes = [8, 255], strides = [1, 1]} : vector<8x256xf32> to vector<8x255xf32>
    %216 = tpu.concatenate %214, %215 in 1 : vector<8x1xf32>, vector<8x255xf32> -> vector<8x256xf32>
    %217 = vector.shape_cast %7 : vector<1x256xi1> to vector<1x256xi1>
    %218 = vector.broadcast %217 : vector<1x256xi1> to vector<8x256xi1>
    %219 = arith.select %218, %213, %216 : vector<8x256xi1>, vector<8x256xf32>
    %220 = vector.extract_strided_slice %210 {offsets = [0, 241], sizes = [8, 15], strides = [1, 1]} : vector<8x256xf32> to vector<8x15xf32>
    %221 = vector.extract_strided_slice %210 {offsets = [0, 0], sizes = [8, 241], strides = [1, 1]} : vector<8x256xf32> to vector<8x241xf32>
    %222 = tpu.concatenate %220, %221 in 1 : vector<8x15xf32>, vector<8x241xf32> -> vector<8x256xf32>
    %223 = vector.extract_strided_slice %210 {offsets = [0, 1], sizes = [8, 255], strides = [1, 1]} : vector<8x256xf32> to vector<8x255xf32>
    %224 = vector.extract_strided_slice %210 {offsets = [0, 0], sizes = [8, 1], strides = [1, 1]} : vector<8x256xf32> to vector<8x1xf32>
    %225 = tpu.concatenate %223, %224 in 1 : vector<8x255xf32>, vector<8x1xf32> -> vector<8x256xf32>
    %226 = vector.shape_cast %9 : vector<1x256xi1> to vector<1x256xi1>
    %227 = vector.broadcast %226 : vector<1x256xi1> to vector<8x256xi1>
    %228 = arith.select %227, %222, %225 : vector<8x256xi1>, vector<8x256xf32>
    %229 = tpu.concatenate %180, %171, %189, %198, %168, %207, %219, %210, %228 in 0 : vector<8x256xf32>, vector<8x256xf32>, vector<8x256xf32>, vector<8x256xf32>, vector<8x256xf32>, vector<8x256xf32>, vector<8x256xf32>, vector<8x256xf32>, vector<8x256xf32> -> vector<72x256xf32>
    %230 = arith.truncf %229 : vector<72x256xf32> to vector<72x256xbf16>
    %c2 = arith.constant 2 : index
    %c0_14 = arith.constant 0 : index
    %c0_15 = arith.constant 0 : index
    %231 = vector.load %arg2[%c2, %c0_14, %c0_15] : memref<4x16x144xbf16, #tpu.memory_space<vmem>>, vector<1x16x144xbf16>
    %232 = vector.shape_cast %231 : vector<1x16x144xbf16> to vector<16x144xbf16>
    %233 = vector.extract_strided_slice %232 {offsets = [0, 0], sizes = [4, 72], strides = [1, 1]} : vector<16x144xbf16> to vector<4x72xbf16>
    %cst_16 = arith.constant dense<0.000000e+00> : vector<4x256xf32>
    %234 = tpu.matmul %233, %230, %cst_16 {dimension_numbers = #tpu.dot_dimension_numbers<[1], [0], [0], [1], [0, 0, 1, 1], [], []>} : vector<4x72xbf16>, vector<72x256xbf16>, vector<4x256xf32> -> vector<4x256xf32>
    %235 = vector.extract_strided_slice %2 {offsets = [0, 4], sizes = [4, 1], strides = [1, 1]} : vector<16x8xf32> to vector<4x1xf32>
    %236 = vector.broadcast %235 : vector<4x1xf32> to vector<4x256xf32>
    %237 = arith.addf %234, %236 : vector<4x256xf32>
    %238 = vector.extract_strided_slice %2 {offsets = [2, 6], sizes = [1, 1], strides = [1, 1]} : vector<16x8xf32> to vector<1x1xf32>
    %cst_17 = arith.constant 0.000000e+00 : f32
    %239 = vector.broadcast %cst_17 : f32 to vector<4x256xf32>
    %240 = arith.cmpf oge, %237, %239 : vector<4x256xf32>
    %241 = vector.broadcast %238 : vector<1x1xf32> to vector<4x256xf32>
    %242 = arith.mulf %241, %237 : vector<4x256xf32>
    %243 = arith.select %240, %237, %242 : vector<4x256xi1>, vector<4x256xf32>
    %244 = vector.extract_strided_slice %243 {offsets = [0, 240], sizes = [4, 16], strides = [1, 1]} : vector<4x256xf32> to vector<4x16xf32>
    %245 = vector.extract_strided_slice %243 {offsets = [0, 0], sizes = [4, 240], strides = [1, 1]} : vector<4x256xf32> to vector<4x240xf32>
    %246 = tpu.concatenate %244, %245 in 1 : vector<4x16xf32>, vector<4x240xf32> -> vector<4x256xf32>
    %247 = vector.extract_strided_slice %246 {offsets = [0, 15], sizes = [4, 241], strides = [1, 1]} : vector<4x256xf32> to vector<4x241xf32>
    %248 = vector.extract_strided_slice %246 {offsets = [0, 0], sizes = [4, 15], strides = [1, 1]} : vector<4x256xf32> to vector<4x15xf32>
    %249 = tpu.concatenate %247, %248 in 1 : vector<4x241xf32>, vector<4x15xf32> -> vector<4x256xf32>
    %250 = vector.extract_strided_slice %246 {offsets = [0, 255], sizes = [4, 1], strides = [1, 1]} : vector<4x256xf32> to vector<4x1xf32>
    %251 = vector.extract_strided_slice %246 {offsets = [0, 0], sizes = [4, 255], strides = [1, 1]} : vector<4x256xf32> to vector<4x255xf32>
    %252 = tpu.concatenate %250, %251 in 1 : vector<4x1xf32>, vector<4x255xf32> -> vector<4x256xf32>
    %253 = vector.shape_cast %7 : vector<1x256xi1> to vector<1x256xi1>
    %254 = vector.broadcast %253 : vector<1x256xi1> to vector<4x256xi1>
    %255 = arith.select %254, %249, %252 : vector<4x256xi1>, vector<4x256xf32>
    %256 = vector.extract_strided_slice %246 {offsets = [0, 241], sizes = [4, 15], strides = [1, 1]} : vector<4x256xf32> to vector<4x15xf32>
    %257 = vector.extract_strided_slice %246 {offsets = [0, 0], sizes = [4, 241], strides = [1, 1]} : vector<4x256xf32> to vector<4x241xf32>
    %258 = tpu.concatenate %256, %257 in 1 : vector<4x15xf32>, vector<4x241xf32> -> vector<4x256xf32>
    %259 = vector.extract_strided_slice %246 {offsets = [0, 1], sizes = [4, 255], strides = [1, 1]} : vector<4x256xf32> to vector<4x255xf32>
    %260 = vector.extract_strided_slice %246 {offsets = [0, 0], sizes = [4, 1], strides = [1, 1]} : vector<4x256xf32> to vector<4x1xf32>
    %261 = tpu.concatenate %259, %260 in 1 : vector<4x255xf32>, vector<4x1xf32> -> vector<4x256xf32>
    %262 = vector.shape_cast %9 : vector<1x256xi1> to vector<1x256xi1>
    %263 = vector.broadcast %262 : vector<1x256xi1> to vector<4x256xi1>
    %264 = arith.select %263, %258, %261 : vector<4x256xi1>, vector<4x256xf32>
    %265 = vector.extract_strided_slice %243 {offsets = [0, 15], sizes = [4, 241], strides = [1, 1]} : vector<4x256xf32> to vector<4x241xf32>
    %266 = vector.extract_strided_slice %243 {offsets = [0, 0], sizes = [4, 15], strides = [1, 1]} : vector<4x256xf32> to vector<4x15xf32>
    %267 = tpu.concatenate %265, %266 in 1 : vector<4x241xf32>, vector<4x15xf32> -> vector<4x256xf32>
    %268 = vector.extract_strided_slice %243 {offsets = [0, 255], sizes = [4, 1], strides = [1, 1]} : vector<4x256xf32> to vector<4x1xf32>
    %269 = vector.extract_strided_slice %243 {offsets = [0, 0], sizes = [4, 255], strides = [1, 1]} : vector<4x256xf32> to vector<4x255xf32>
    %270 = tpu.concatenate %268, %269 in 1 : vector<4x1xf32>, vector<4x255xf32> -> vector<4x256xf32>
    %271 = vector.shape_cast %7 : vector<1x256xi1> to vector<1x256xi1>
    %272 = vector.broadcast %271 : vector<1x256xi1> to vector<4x256xi1>
    %273 = arith.select %272, %267, %270 : vector<4x256xi1>, vector<4x256xf32>
    %274 = vector.extract_strided_slice %243 {offsets = [0, 241], sizes = [4, 15], strides = [1, 1]} : vector<4x256xf32> to vector<4x15xf32>
    %275 = vector.extract_strided_slice %243 {offsets = [0, 0], sizes = [4, 241], strides = [1, 1]} : vector<4x256xf32> to vector<4x241xf32>
    %276 = tpu.concatenate %274, %275 in 1 : vector<4x15xf32>, vector<4x241xf32> -> vector<4x256xf32>
    %277 = vector.extract_strided_slice %243 {offsets = [0, 1], sizes = [4, 255], strides = [1, 1]} : vector<4x256xf32> to vector<4x255xf32>
    %278 = vector.extract_strided_slice %243 {offsets = [0, 0], sizes = [4, 1], strides = [1, 1]} : vector<4x256xf32> to vector<4x1xf32>
    %279 = tpu.concatenate %277, %278 in 1 : vector<4x255xf32>, vector<4x1xf32> -> vector<4x256xf32>
    %280 = vector.shape_cast %9 : vector<1x256xi1> to vector<1x256xi1>
    %281 = vector.broadcast %280 : vector<1x256xi1> to vector<4x256xi1>
    %282 = arith.select %281, %276, %279 : vector<4x256xi1>, vector<4x256xf32>
    %283 = vector.extract_strided_slice %243 {offsets = [0, 16], sizes = [4, 240], strides = [1, 1]} : vector<4x256xf32> to vector<4x240xf32>
    %284 = vector.extract_strided_slice %243 {offsets = [0, 0], sizes = [4, 16], strides = [1, 1]} : vector<4x256xf32> to vector<4x16xf32>
    %285 = tpu.concatenate %283, %284 in 1 : vector<4x240xf32>, vector<4x16xf32> -> vector<4x256xf32>
    %286 = vector.extract_strided_slice %285 {offsets = [0, 15], sizes = [4, 241], strides = [1, 1]} : vector<4x256xf32> to vector<4x241xf32>
    %287 = vector.extract_strided_slice %285 {offsets = [0, 0], sizes = [4, 15], strides = [1, 1]} : vector<4x256xf32> to vector<4x15xf32>
    %288 = tpu.concatenate %286, %287 in 1 : vector<4x241xf32>, vector<4x15xf32> -> vector<4x256xf32>
    %289 = vector.extract_strided_slice %285 {offsets = [0, 255], sizes = [4, 1], strides = [1, 1]} : vector<4x256xf32> to vector<4x1xf32>
    %290 = vector.extract_strided_slice %285 {offsets = [0, 0], sizes = [4, 255], strides = [1, 1]} : vector<4x256xf32> to vector<4x255xf32>
    %291 = tpu.concatenate %289, %290 in 1 : vector<4x1xf32>, vector<4x255xf32> -> vector<4x256xf32>
    %292 = vector.shape_cast %7 : vector<1x256xi1> to vector<1x256xi1>
    %293 = vector.broadcast %292 : vector<1x256xi1> to vector<4x256xi1>
    %294 = arith.select %293, %288, %291 : vector<4x256xi1>, vector<4x256xf32>
    %295 = vector.extract_strided_slice %285 {offsets = [0, 241], sizes = [4, 15], strides = [1, 1]} : vector<4x256xf32> to vector<4x15xf32>
    %296 = vector.extract_strided_slice %285 {offsets = [0, 0], sizes = [4, 241], strides = [1, 1]} : vector<4x256xf32> to vector<4x241xf32>
    %297 = tpu.concatenate %295, %296 in 1 : vector<4x15xf32>, vector<4x241xf32> -> vector<4x256xf32>
    %298 = vector.extract_strided_slice %285 {offsets = [0, 1], sizes = [4, 255], strides = [1, 1]} : vector<4x256xf32> to vector<4x255xf32>
    %299 = vector.extract_strided_slice %285 {offsets = [0, 0], sizes = [4, 1], strides = [1, 1]} : vector<4x256xf32> to vector<4x1xf32>
    %300 = tpu.concatenate %298, %299 in 1 : vector<4x255xf32>, vector<4x1xf32> -> vector<4x256xf32>
    %301 = vector.shape_cast %9 : vector<1x256xi1> to vector<1x256xi1>
    %302 = vector.broadcast %301 : vector<1x256xi1> to vector<4x256xi1>
    %303 = arith.select %302, %297, %300 : vector<4x256xi1>, vector<4x256xf32>
    %304 = tpu.concatenate %255, %246, %264, %273, %243, %282, %294, %285, %303 in 0 : vector<4x256xf32>, vector<4x256xf32>, vector<4x256xf32>, vector<4x256xf32>, vector<4x256xf32>, vector<4x256xf32>, vector<4x256xf32>, vector<4x256xf32>, vector<4x256xf32> -> vector<36x256xf32>
    %305 = arith.truncf %304 : vector<36x256xf32> to vector<36x256xbf16>
    %c3 = arith.constant 3 : index
    %c0_18 = arith.constant 0 : index
    %c0_19 = arith.constant 0 : index
    %306 = vector.load %arg2[%c3, %c0_18, %c0_19] : memref<4x16x144xbf16, #tpu.memory_space<vmem>>, vector<1x16x144xbf16>
    %307 = vector.shape_cast %306 : vector<1x16x144xbf16> to vector<16x144xbf16>
    %308 = vector.extract_strided_slice %307 {offsets = [0, 0], sizes = [1, 36], strides = [1, 1]} : vector<16x144xbf16> to vector<1x36xbf16>
    %cst_20 = arith.constant dense<0.000000e+00> : vector<1x256xf32>
    %309 = tpu.matmul %308, %305, %cst_20 {dimension_numbers = #tpu.dot_dimension_numbers<[1], [0], [0], [1], [0, 0, 1, 1], [], []>} : vector<1x36xbf16>, vector<36x256xbf16>, vector<1x256xf32> -> vector<1x256xf32>
    %310 = vector.extract_strided_slice %2 {offsets = [0, 5], sizes = [1, 1], strides = [1, 1]} : vector<16x8xf32> to vector<1x1xf32>
    %311 = vector.broadcast %310 : vector<1x1xf32> to vector<1x256xf32>
    %312 = arith.addf %309, %311 : vector<1x256xf32>
    %cst_21 = arith.constant 0.000000e+00 : f32
    %313 = vector.broadcast %cst_21 : f32 to vector<1x256xf32>
    %314 = arith.subf %313, %312 : vector<1x256xf32>
    %315 = math.exp %314 : vector<1x256xf32>
    %cst_22 = arith.constant 1.000000e+00 : f32
    %316 = vector.broadcast %cst_22 : f32 to vector<1x256xf32>
    %317 = arith.addf %316, %315 : vector<1x256xf32>
    %318 = tpu.reciprocal %317 {approx = true} : vector<1x256xf32> -> vector<1x256xf32>
    %c0_23 = arith.constant 0 : index
    %c0_24 = arith.constant 0 : index
    %c0_25 = arith.constant 0 : index
    %319 = vector.load %arg4[%c0_23, %c0_24, %c0_25] : memref<1x1x256xf32, #tpu.memory_space<vmem>>, vector<1x1x256xf32>
    %320 = vector.shape_cast %319 : vector<1x1x256xf32> to vector<1x256xf32>
    %321 = vector.shape_cast %318 : vector<1x256xf32> to vector<1x1x256xf32>
    tpu.vector_store %arg4[%c0_23, %c0_24, %c0_25], %321 {strides = array<i32>} : memref<1x1x256xf32, #tpu.memory_space<vmem>>, vector<1x1x256xf32>,
    return
  }
  func.func @transform_0(%arg0: i32) -> (i32, i32, i32) {
    %c0_i32 = arith.constant 0 : i32
    %c0_i32_0 = arith.constant 0 : i32
    %c0_i32_1 = arith.constant 0 : i32
    return %arg0, %c0_i32, %c0_i32_0 : i32, i32, i32
  }
  func.func @transform_1(%arg0: i32) -> (i32, i32, i32) {
    %c0_i32 = arith.constant 0 : i32
    %c0_i32_0 = arith.constant 0 : i32
    %c0_i32_1 = arith.constant 0 : i32
    %c0_i32_2 = arith.constant 0 : i32
    return %c0_i32, %c0_i32_0, %c0_i32_1 : i32, i32, i32
  }
  func.func @transform_2(%arg0: i32) -> (i32, i32) {
    %c0_i32 = arith.constant 0 : i32
    %c0_i32_0 = arith.constant 0 : i32
    %c0_i32_1 = arith.constant 0 : i32
    return %c0_i32, %c0_i32_0 : i32, i32
  }
  func.func @transform_3(%arg0: i32) -> (i32, i32, i32) {
    %c0_i32 = arith.constant 0 : i32
    %c0_i32_0 = arith.constant 0 : i32
    %c0_i32_1 = arith.constant 0 : i32
    return %arg0, %c0_i32, %c0_i32_0 : i32, i32, i32
  }
}

</mosaic_0001>

<llo_original>
// kernel: relaxed_forward_net.1
$region0: #{relaxed_forward_net.1}
  #allocation0 [shape = 'u32[]', space=smem, size = 0x4, offset = 0x4, fixed_abs, tag = 'smem constant byte address 0x4 - core index']
  #allocation1 [shape = 'u32[144,128]{1,0:T(1,128)}', space=vmem, size = 0x12000, scoped, tag = 'internal scratch']
  %s0 = inlined_call_operand.vmem [shape: f32[2,1,256], index: 0, kind: input, shape index: {}]
  %s1 = inlined_call_operand.hbm [shape: bf16[4,16,144], index: 1, kind: input, shape index: {}]
  %s2 = inlined_call_operand.vmem [shape: f32[16,8], index: 2, kind: input, shape index: {}]
  %s3 = inlined_call_operand.vmem [shape: f32[2,1,256], index: 3, kind: output, shape index: {}]
  %s4 = sld [smem:[#allocation0]]
  $region49: #{relaxed_forward_net.1} parent=0
    _
  %s6 = ssub.s32 1, %s4
  %s7 = scalar_select 0, %s6, %s4
  $region1: #{relaxed_forward_net.1} parent=0
    #allocation2 [shape = 'u8[32768]{0}', space=vmem, size = 0x8000, scoped, tag = 'input window, operand 1, single buffered']
    #allocation3 [shape = 's32[2]{0}', space=sflag, size = 0x8, scoped, tag = 'scoped memory for relaxed_forward_net.1']
    %8 = vsyncpa [#allocation3], 0
    loop: start=0, step=1, limit=4
    $region2: #{relaxed_forward_net.1} parent=1 // loop_pre_header
      _
    $region3: #{relaxed_forward_net.1} parent=1 // loop_header
      %s10 = sphi 0, %s14
      %p11 = scmp.ge.s32.totalorder %s10, 4
      %s20 = sphi 0, %s22
      %s23 = sphi 0, %s20
      %s24 = sphi 0, %s23
      %s40 = sphi 0, %s24
      %s44 = sphi 0, %s44
      %s46 = sphi 0, %s44
      %s47 = sphi 0, %s46
      %s61 = sphi 0, %s47
      %s65 = sphi 0, %s65
      %s67 = sphi 0, %s65
      %s68 = sphi 0, %s67
      %s82 = sphi 0, %s68
      %s88 = sphi 0, %s90
      %s91 = sphi 0, %s88
      %s92 = sphi 0, %s91
      %s108 = sphi 0, %s92
    $region4: #{relaxed_forward_net.1} parent=1 // loop_header_branch
      %13 = sbr.rel (%p11) target = $region8
    $region5: #{relaxed_forward_net.1} parent=1 // loop_body
      %s15 = ssub.s32 %s10, 1
      %s16 = ssub.s32 %s10, 2
      %s17 = sadd.s32 %s10, 1
      %s18 = ssub.s32 %s10, %s17
      %p19 = scmp.eq.s32.totalorder %s18, 0
      %s21 = sadd.s32 %s20, 1
      %s22 = scalar_select %p19, %s20, %s21
      %p25 = pneg %p19
      %p26 = scmp.eq.s32.totalorder %s10, 1
      %p27 = por %p25, %p26
      %p28 = scmp.ne.s32.totalorder %s20, %s23
      %p29 = scmp.eq.s32.totalorder %s10, 0
      %p30 = por %p28, %p29
      %p31 = scmp.ne.s32.totalorder %s20, %s23
      %p32 = scmp.eq.s32.totalorder %s15, 1
      %p33 = por %p31, %p32
      %p34 = scmp.ne.s32.totalorder %s23, %s24
      %p35 = scmp.eq.s32.totalorder %s15, 0
      %p36 = por %p34, %p35
      %p37 = scmp.ne.s32.totalorder %s23, %s24
      %p38 = scmp.eq.s32.totalorder %s16, 1
      %p39 = por %p37, %p38
      %p41 = scmp.ne.s32.totalorder %s24, %s40
      %p42 = scmp.eq.s32.totalorder %s16, 0
      %p43 = por %p41, %p42
      %s45 = sadd.s32 %s44, 1
      %p48 = scmp.eq.s32.totalorder %s10, 1
      %p49 = scmp.ne.s32.totalorder %s44, %s46
      %p50 = scmp.eq.s32.totalorder %s10, 0
      %p51 = por %p49, %p50
      %p52 = scmp.ne.s32.totalorder %s44, %s46
      %p53 = scmp.eq.s32.totalorder %s15, 1
      %p54 = por %p52, %p53
      %p55 = scmp.ne.s32.totalorder %s46, %s47
      %p56 = scmp.eq.s32.totalorder %s15, 0
      %p57 = por %p55, %p56
      %p58 = scmp.ne.s32.totalorder %s46, %s47
      %p59 = scmp.eq.s32.totalorder %s16, 1
      %p60 = por %p58, %p59
      %p62 = scmp.ne.s32.totalorder %s47, %s61
      %p63 = scmp.eq.s32.totalorder %s16, 0
      %p64 = por %p62, %p63
      %s66 = sadd.s32 %s65, 1
      %p69 = scmp.eq.s32.totalorder %s10, 1
      %p70 = scmp.ne.s32.totalorder %s65, %s67
      %p71 = scmp.eq.s32.totalorder %s10, 0
      %p72 = por %p70, %p71
      %p73 = scmp.ne.s32.totalorder %s65, %s67
      %p74 = scmp.eq.s32.totalorder %s15, 1
      %p75 = por %p73, %p74
      %p76 = scmp.ne.s32.totalorder %s67, %s68
      %p77 = scmp.eq.s32.totalorder %s15, 0
      %p78 = por %p76, %p77
      %p79 = scmp.ne.s32.totalorder %s67, %s68
      %p80 = scmp.eq.s32.totalorder %s16, 1
      %p81 = por %p79, %p80
      %p83 = scmp.ne.s32.totalorder %s68, %s82
      %p84 = scmp.eq.s32.totalorder %s16, 0
      %p85 = por %p83, %p84
      %s86 = ssub.s32 %s10, %s17
      %p87 = scmp.eq.s32.totalorder %s86, 0
      %s89 = sadd.s32 %s88, 1
      %s90 = scalar_select %p87, %s88, %s89
      %p93 = pneg %p87
      %p94 = scmp.eq.s32.totalorder %s10, 1
      %p95 = por %p93, %p94
      %p96 = scmp.ne.s32.totalorder %s88, %s91
      %p97 = scmp.eq.s32.totalorder %s10, 0
      %p98 = por %p96, %p97
      %p99 = scmp.ne.s32.totalorder %s88, %s91
      %p100 = scmp.eq.s32.totalorder %s15, 1
      %p101 = por %p99, %p100
      %p102 = scmp.ne.s32.totalorder %s91, %s92
      %p103 = scmp.eq.s32.totalorder %s15, 0
      %p104 = por %p102, %p103
      %p105 = scmp.ne.s32.totalorder %s91, %s92
      %p106 = scmp.eq.s32.totalorder %s16, 1
      %p107 = por %p105, %p106
      %p109 = scmp.ne.s32.totalorder %s92, %s108
      %p110 = scmp.eq.s32.totalorder %s16, 0
      %p111 = por %p109, %p110
      %p112 = scmp.le.s32.totalorder 1, %s10
      %p113 = scmp.lt.s32.totalorder %s10, 3
      %p114 = pnand %p112, %p113
      %p115 = pneg %p114
      // Predicated region
      $region9: #{relaxed_forward_net.1} parent=5 // pred_check
        _
      $region10: #{relaxed_forward_net.1} parent=5 // pred_check_branch
        %117 = sbr.rel (%p114) target = $region12
      $region11: #{relaxed_forward_net.1} parent=5 // pred_region
        %s118 = ssub.s32 %s10, 1
        // Predicated region
        $region13: #{relaxed_forward_net.1} parent=11 // pred_check
          %p119 = pneg %p57
        $region14: #{relaxed_forward_net.1} parent=11 // pred_check_branch
          %121 = sbr.rel (%p119) target = $region16
        $region15: #{relaxed_forward_net.1} parent=11 // pred_region
          %s123 = ssub.s32 1024, 1024
          %124 = vsyncadd [#allocation3], %s123
          %s125 = sshll.u32 [#allocation2], 4
          %s126 = int_to_ptr.vmem [resolvable:$true] %s125
          %131 = dma.hbm_to_vmem [thread:$0]  %s1, 1024, %s126, [#allocation3], 128, 128, 8
        $region16: #{relaxed_forward_net.1} parent=11 // pred_fallthru
          _
        // Predicated region
        $region17: #{relaxed_forward_net.1} parent=11 // pred_check
          %p132 = pneg %p78
        $region18: #{relaxed_forward_net.1} parent=11 // pred_check_branch
          %134 = sbr.rel (%p132) target = $region20
        $region19: #{relaxed_forward_net.1} parent=11 // pred_region
          _
        $region20: #{relaxed_forward_net.1} parent=11 // pred_fallthru
          _
      $region12: #{relaxed_forward_net.1} parent=5 // pred_fallthru
        _
      %p135 = scmp.lt.s32.totalorder %s10, 2
      // Predicated region
      $region21: #{relaxed_forward_net.1} parent=5 // pred_check
        %p136 = pneg %p135
      $region22: #{relaxed_forward_net.1} parent=5 // pred_check_branch
        %138 = sbr.rel (%p136) target = $region24
      $region23: #{relaxed_forward_net.1} parent=5 // pred_region
        // Predicated region
        $region25: #{relaxed_forward_net.1} parent=23 // pred_check
          %p139 = pneg %p30
        $region26: #{relaxed_forward_net.1} parent=23 // pred_check_branch
          %141 = sbr.rel (%p139) target = $region28
        $region27: #{relaxed_forward_net.1} parent=23 // pred_region
          %p142 = scmp.lt.s32.totalorder %s10, 1
          %s143 = scalar_select %p142, %s10, 1
          %s144 = smul.addr %s143, 2
          %s145 = scalar_lea.vmem %s0, %s144
        $region28: #{relaxed_forward_net.1} parent=23 // pred_fallthru
          _
      $region24: #{relaxed_forward_net.1} parent=5 // pred_fallthru
        _
      %p146 = scmp.le.s32.totalorder 1, %s10
      %p147 = scmp.lt.s32.totalorder %s10, 3
      %p148 = pnand %p146, %p147
      %p149 = pneg %p148
      // Predicated region
      $region29: #{relaxed_forward_net.1} parent=5 // pred_check
        _
      $region30: #{relaxed_forward_net.1} parent=5 // pred_check_branch
        %151 = sbr.rel (%p148) target = $region32
      $region31: #{relaxed_forward_net.1} parent=5 // pred_region
        %s152 = ssub.s32 %s10, 1
        // Predicated region
        $region33: #{relaxed_forward_net.1} parent=31 // pred_check
          %p153 = pneg %p57
        $region34: #{relaxed_forward_net.1} parent=31 // pred_check_branch
          %155 = sbr.rel (%p153) target = $region36
        $region35: #{relaxed_forward_net.1} parent=31 // pred_region
          %156 = dma.done [#allocation3], 1024
        $region36: #{relaxed_forward_net.1} parent=31 // pred_fallthru
          _
        %p157 = scmp.lt.s32.totalorder %s15, 1
        %s158 = scalar_select %p157, %s15, 1
        %s159 = smul.addr %s158, 2
        %s160 = scalar_lea.vmem %s0, %s159
        %p161 = pneg %p36
        %p162 = pneg %p33
        %p163 = pneg %p57
        %p164 = pneg %p54
        %p165 = pneg %p78
        %p166 = pneg %p75
        %p167 = pneg %p104
        %p168 = pneg %p101
        %p169 = scmp.lt.s32.totalorder %s15, 1
        %s170 = scalar_select %p169, %s15, 1
        %s171 = smul.addr %s170, 2
        %s172 = scalar_lea.vmem %s3, %s171
        %p173 = scmp.lt.s32.totalorder %s15, 1
        %s174 = scalar_select %p173, %s15, 1
        %s175 = smul.addr %s174, 2
        %s176 = scalar_lea.vmem %s0, %s175
        %p177 = scmp.lt.s32.totalorder %s15, 1
        %s178 = scalar_select %p177, %s15, 1
        %s179 = smul.addr %s178, 2
        %s180 = scalar_lea.vmem %s3, %s179
        %v182 = vld [vmem:[%s176] sm:$0x3]
        %v183 = vld [vmem:[%s2] sm:$0xff]
        %v184 = vld [vmem:[%s2 + $0x8] sm:$0xff]
        %v185 = vlaneseq
        %v186 = vand.u32 %v185, 127
        %v187 = vadd.s32 %v186, 128
        %v188 = vand.u32 %v186, 15
        %v189 = vand.u32 %v187, 15
        %vm190 = vcmp.eq.s32.totalorder %v188, 0
        %vm191 = vcmp.eq.s32.totalorder %v189, 0
        %vm192 = vcmp.eq.s32.totalorder %v188, 15
        %vm193 = vcmp.eq.s32.totalorder %v189, 15
        %v195 = vlaneseq
        %v196 = vshrl.u32 %v195, 7
        %v197 = vsub.s32 0, %v196
        %v198 = vrot.slane %v182, %v197
        %v199 = vlaneseq
        %v200 = vshrl.u32 %v199, 7
        %v201 = vsub.s32 1, %v200
        %v202 = vrot.slane %v182, %v201
        %206 = vset.pattern.permute.xlu0 0
        %207 = vperm.xlu0 %206, %v183
        %v208 = vpop.permute.xlu0 %207
        %v210 = vmul.f32 %v198, %v208
        %v211 = vmul.f32 %v202, %v208
        %212 = vset.pattern.permute.xlu0 1
        %213 = vperm.xlu0 %212, %v183
        %v214 = vpop.permute.xlu0 %213
        %v216 = vadd.f32 %v210, %v214
        %v217 = vadd.f32 %v211, %v214
        %v218 = vmax.f32 %v216, 0.0
        %v219 = vmax.f32 %v217, 0.0
        %221 = vrot.lane.b32.xlu0 %v219, 16
        %v222 = vpop.permute.xlu0 %221
        %225 = vrot.lane.b32.xlu0 %v218, 16
        %v226 = vpop.permute.xlu0 %225
        %vm227 = vcmask 130048
        %v228 = vsel %vm227, %v226, %v222
        %v231 = vsel %vm227, %v222, %v226
        %233 = vrot.lane.b32.xlu0 %v231, 113
        %v234 = vpop.permute.xlu0 %233
        %235 = vrot.lane.b32.xlu0 %v228, 113
        %v236 = vpop.permute.xlu0 %235
        %vm237 = vcmask 924672
        %v238 = vsel %vm237, %v234, %v236
        %v242 = vsel %vm237, %v236, %v234
        %243 = vrot.lane.b32.xlu0 %v228, 1
        %v244 = vpop.permute.xlu0 %243
        %246 = vrot.lane.b32.xlu0 %v231, 1
        %v247 = vpop.permute.xlu0 %246
        %vm248 = vcmask 7168
        %v249 = vsel %vm248, %v247, %v244
        %v252 = vsel %vm248, %v244, %v247
        %v253 = vsel %vm190, 1, 0
        %v254 = vsel %vm191, 1, 0
        %vm255 = vcmp.eq.s32.totalorder %v253, 1
        %vm256 = vcmp.eq.s32.totalorder %v254, 1
        %v257 = vsel %vm255, %v238, %v252
        %v258 = vsel %vm256, %v242, %v249
        %259 = vrot.lane.b32.xlu0 %v228, 15
        %v260 = vpop.permute.xlu0 %259
        %262 = vrot.lane.b32.xlu0 %v231, 15
        %v263 = vpop.permute.xlu0 %262
        %vm264 = vcmask 121856
        %v265 = vsel %vm264, %v263, %v260
        %v268 = vsel %vm264, %v260, %v263
        %269 = vrot.lane.b32.xlu0 %v231, 127
        %v270 = vpop.permute.xlu0 %269
        %271 = vrot.lane.b32.xlu0 %v228, 127
        %v272 = vpop.permute.xlu0 %271
        %vm273 = vcmask 1039360
        %v274 = vsel %vm273, %v270, %v272
        %v278 = vsel %vm273, %v272, %v270
        %v279 = vsel %vm192, 1, 0
        %v280 = vsel %vm193, 1, 0
        %vm281 = vcmp.eq.s32.totalorder %v279, 1
        %vm282 = vcmp.eq.s32.totalorder %v280, 1
        %v283 = vsel %vm281, %v268, %v274
        %v284 = vsel %vm282, %v265, %v278
        %285 = vrot.lane.b32.xlu0 %v218, 113
        %v286 = vpop.permute.xlu0 %285
        %287 = vrot.lane.b32.xlu0 %v219, 113
        %v288 = vpop.permute.xlu0 %287
        %v289 = vsel %vm237, %v286, %v288
        %v293 = vsel %vm237, %v288, %v286
        %294 = vrot.lane.b32.xlu0 %v219, 1
        %v295 = vpop.permute.xlu0 %294
        %297 = vrot.lane.b32.xlu0 %v218, 1
        %v298 = vpop.permute.xlu0 %297
        %v299 = vsel %vm248, %v298, %v295
        %v302 = vsel %vm248, %v295, %v298
        %v303 = vsel %vm255, %v289, %v302
        %v304 = vsel %vm256, %v293, %v299
        %305 = vrot.lane.b32.xlu0 %v219, 15
        %v306 = vpop.permute.xlu0 %305
        %308 = vrot.lane.b32.xlu0 %v218, 15
        %v309 = vpop.permute.xlu0 %308
        %v310 = vsel %vm264, %v309, %v306
        %v313 = vsel %vm264, %v306, %v309
        %314 = vrot.lane.b32.xlu0 %v218, 127
        %v315 = vpop.permute.xlu0 %314
        %316 = vrot.lane.b32.xlu0 %v219, 127
        %v317 = vpop.permute.xlu0 %316
        %v318 = vsel %vm273, %v315, %v317
        %v322 = vsel %vm273, %v317, %v315
        %v323 = vsel %vm281, %v313, %v318
        %v324 = vsel %vm282, %v310, %v322
        %325 = vrot.lane.b32.xlu0 %v218, 112
        %v326 = vpop.permute.xlu0 %325
        %327 = vrot.lane.b32.xlu0 %v219, 112
        %v328 = vpop.permute.xlu0 %327
        %vm329 = vcmask 916480
        %v330 = vsel %vm329, %v326, %v328
        %v334 = vsel %vm329, %v328, %v326
        %336 = vrot.lane.b32.xlu0 %v330, 113
        %v337 = vpop.permute.xlu0 %336
        %338 = vrot.lane.b32.xlu0 %v334, 113
        %v339 = vpop.permute.xlu0 %338
        %v340 = vsel %vm237, %v337, %v339
        %v344 = vsel %vm237, %v339, %v337
        %345 = vrot.lane.b32.xlu0 %v334, 1
        %v346 = vpop.permute.xlu0 %345
        %348 = vrot.lane.b32.xlu0 %v330, 1
        %v349 = vpop.permute.xlu0 %348
        %v350 = vsel %vm248, %v349, %v346
        %v353 = vsel %vm248, %v346, %v349
        %v354 = vsel %vm255, %v340, %v353
        %v355 = vsel %vm256, %v344, %v350
        %356 = vrot.lane.b32.xlu0 %v334, 15
        %v357 = vpop.permute.xlu0 %356
        %359 = vrot.lane.b32.xlu0 %v330, 15
        %v360 = vpop.permute.xlu0 %359
        %v361 = vsel %vm264, %v360, %v357
        %v364 = vsel %vm264, %v357, %v360
        %365 = vrot.lane.b32.xlu0 %v330, 127
        %v366 = vpop.permute.xlu0 %365
        %367 = vrot.lane.b32.xlu0 %v334, 127
        %v368 = vpop.permute.xlu0 %367
        %v369 = vsel %vm273, %v366, %v368
        %v373 = vsel %vm273, %v368, %v366
        %v374 = vsel %vm281, %v364, %v369
        %v375 = vsel %vm282, %v361, %v373
        %v376 = vpack.c.bf16 %v231, %v257
        %v377 = vpack.c.bf16 %v228, %v258
        %v378 = vpack.c.bf16 %v303, %v283
        %v379 = vpack.c.bf16 %v304, %v284
        %v380 = vpack.c.bf16 %v323, %v218
        %v381 = vpack.c.bf16 %v324, %v219
        %v382 = vpack.c.bf16 %v330, %v354
        %v383 = vpack.c.bf16 %v334, %v355
        %v384 = vpack.c.bf16 %v374, %v374
        %v385 = vpack.c.bf16 %v375, %v375
        %v386 = vld [vmem:[#allocation2] sm:$0xff]
        %v387 = vld [vmem:[#allocation2 + $0x8] sm:$0xff]
        %388 = vset.pattern.permute.xlu0 2
        %389 = vperm.xlu0 %388, %v183
        %v390 = vpop.permute.xlu0 %389
        %393 = vset.pattern.permute.xlu0 2
        %394 = vperm.xlu0 %393, %v184
        %v395 = vpop.permute.xlu0 %394
        %v399 = vunpack.c.l.b16 %v386
        %v400 = vunpack.c.l.b16 %v387
        %v401 = vpack.c.b16 %v400, %v399
        %vm402 = vcmask 588800
        %v404 = vsel %vm402, %v401, 0
        %vm406 = vcmask 1043456
        %v408 = vsel %vm406, %v384, 0
        %v411 = vsel %vm406, %v385, 0
        %413 = vmatprep.subr.bf16.mxu0 0
        %414 = vmatpush1.bf16.msra.mxu0 0
        %415 = vmatprep.subr.bf16.mxu0 0
        %416 = vmatpush1.bf16.msra.mxu0 0
        %417 = vmatprep.subr.bf16.mxu0 0
        %418 = vmatpush1.bf16.msra.mxu0 0
        %419 = vmatprep.subr.bf16.mxu0 %v411
        %420 = vmatpush1.bf16.msra.mxu0 %v408
        %421 = vmatprep.subr.bf16.mxu0 %v383
        %422 = vmatpush1.bf16.msra.mxu0 %v382
        %423 = vmatprep.subr.bf16.mxu0 %v381
        %424 = vmatpush1.bf16.msra.mxu0 %v380
        %425 = vmatprep.subr.bf16.mxu0 %v379
        %426 = vmatpush1.bf16.msra.mxu0 %v378
        %427 = vmatprep.subr.bf16.mxu0 %v377
        %428 = vmatpush1.bf16.msra.mxu0 %v376
        %429 = vmatprep.subr.bf16.mxu0 0
        %430 = vmatpush2.bf16.msra.mxu0 0
        %431 = vmatprep.subr.bf16.mxu0 0
        %432 = vmatpush2.bf16.msra.mxu0 0
        %433 = vmatprep.subr.bf16.mxu0 0
        %434 = vmatpush2.bf16.msra.mxu0 0
        %435 = vmatprep.subr.bf16.mxu0 0
        %436 = vmatpush2.bf16.msra.mxu0 0
        %437 = vmatprep.subr.bf16.mxu0 0
        %438 = vmatpush2.bf16.msra.mxu0 0
        %439 = vmatprep.subr.bf16.mxu0 0
        %440 = vmatpush2.bf16.msra.mxu0 0
        %441 = vmatprep.subr.bf16.mxu0 0
        %442 = vmatpush2.bf16.msra.mxu0 0
        %443 = vmatprep.subr.bf16.mxu0 0
        %444 = vmatpush2.bf16.msra.mxu0 0
        %445 = vmatprep.mubr.bf16.mxu0 0
        %446 = vmatmul.mubr.bf16.gmra.mxu0 %v404
        %v447 = vpop.f32.mrf.mxu0
        %v448 = vadd.f32 %v390, %v447
        %v449 = vpop.f32.mrf.mxu0
        %v450 = vadd.f32 %v390, %v449
        %v451 = vpop.f32.mrf.mxu0
        %v452 = vadd.f32 %v395, %v451
        %v453 = vpop.f32.mrf.mxu0
        %v454 = vadd.f32 %v395, %v453
        %455 = vdwg.mxu0
        %vm456 = vcmp.ge.f32.partialorder %v448, 0.0
        %vm457 = vcmp.ge.f32.partialorder %v450, 0.0
        %vm458 = vcmp.ge.f32.partialorder %v452, 0.0
        %vm459 = vcmp.ge.f32.partialorder %v454, 0.0
        %460 = vrot.lane.b32.xlu0 %v183, 122
        %v461 = vpop.permute.xlu0 %460
        %s462 = vtos %v461
        %v463 = vstv %s462
        %v465 = vmul.f32 %v463, %v448
        %v466 = vmul.f32 %v463, %v450
        %v467 = vmul.f32 %v463, %v452
        %v468 = vmul.f32 %v463, %v454
        %v469 = vsel %vm456, %v448, %v465
        %v470 = vsel %vm457, %v450, %v466
        %v471 = vsel %vm458, %v452, %v467
        %v472 = vsel %vm459, %v454, %v468
        %475 = vrot.lane.b32.xlu0 %v470, 16
        %v476 = vpop.permute.xlu0 %475
        %477 = vrot.lane.b32.xlu0 %v472, 16
        %v478 = vpop.permute.xlu0 %477
        %483 = vrot.lane.b32.xlu0 %v469, 16
        %v484 = vpop.permute.xlu0 %483
        %485 = vrot.lane.b32.xlu0 %v471, 16
        %v486 = vpop.permute.xlu0 %485
        %v487 = vsel %vm227, %v484, %v476
        %v488 = vsel %vm227, %v486, %v478
        %v493 = vsel %vm227, %v476, %v484
        %v494 = vsel %vm227, %v478, %v486
        %497 = vrot.lane.b32.xlu0 %v493, 113
        %v498 = vpop.permute.xlu0 %497
        %499 = vrot.lane.b32.xlu0 %v487, 113
        %v500 = vpop.permute.xlu0 %499
        %501 = vrot.lane.b32.xlu0 %v494, 113
        %v502 = vpop.permute.xlu0 %501
        %503 = vrot.lane.b32.xlu0 %v488, 113
        %v504 = vpop.permute.xlu0 %503
        %v505 = vsel %vm237, %v498, %v500
        %v506 = vsel %vm237, %v502, %v504
        %v513 = vsel %vm237, %v500, %v498
        %v514 = vsel %vm237, %v504, %v502
        %515 = vrot.lane.b32.xlu0 %v487, 1
        %v516 = vpop.permute.xlu0 %515
        %517 = vrot.lane.b32.xlu0 %v488, 1
        %v518 = vpop.permute.xlu0 %517
        %521 = vrot.lane.b32.xlu0 %v493, 1
        %v522 = vpop.permute.xlu0 %521
        %523 = vrot.lane.b32.xlu0 %v494, 1
        %v524 = vpop.permute.xlu0 %523
        %v525 = vsel %vm248, %v522, %v516
        %v526 = vsel %vm248, %v524, %v518
        %v531 = vsel %vm248, %v516, %v522
        %v532 = vsel %vm248, %v518, %v524
        %v533 = vsel %vm255, %v505, %v531
        %v534 = vsel %vm256, %v513, %v525
        %v535 = vsel %vm255, %v506, %v532
        %v536 = vsel %vm256, %v514, %v526
        %537 = vrot.lane.b32.xlu0 %v487, 15
        %v538 = vpop.permute.xlu0 %537
        %539 = vrot.lane.b32.xlu0 %v488, 15
        %v540 = vpop.permute.xlu0 %539
        %543 = vrot.lane.b32.xlu0 %v493, 15
        %v544 = vpop.permute.xlu0 %543
        %545 = vrot.lane.b32.xlu0 %v494, 15
        %v546 = vpop.permute.xlu0 %545
        %v547 = vsel %vm264, %v544, %v538
        %v548 = vsel %vm264, %v546, %v540
        %v553 = vsel %vm264, %v538, %v544
        %v554 = vsel %vm264, %v540, %v546
        %555 = vrot.lane.b32.xlu0 %v493, 127
        %v556 = vpop.permute.xlu0 %555
        %557 = vrot.lane.b32.xlu0 %v487, 127
        %v558 = vpop.permute.xlu0 %557
        %559 = vrot.lane.b32.xlu0 %v494, 127
        %v560 = vpop.permute.xlu0 %559
        %561 = vrot.lane.b32.xlu0 %v488, 127
        %v562 = vpop.permute.xlu0 %561
        %v563 = vsel %vm273, %v556, %v558
        %v564 = vsel %vm273, %v560, %v562
        %v571 = vsel %vm273, %v558, %v556
        %v572 = vsel %vm273, %v562, %v560
        %v573 = vsel %vm281, %v553, %v563
        %v574 = vsel %vm282, %v547, %v571
        %v575 = vsel %vm281, %v554, %v564
        %v576 = vsel %vm282, %v548, %v572
        %577 = vrot.lane.b32.xlu0 %v469, 113
        %v578 = vpop.permute.xlu0 %577
        %579 = vrot.lane.b32.xlu0 %v470, 113
        %v580 = vpop.permute.xlu0 %579
        %581 = vrot.lane.b32.xlu0 %v471, 113
        %v582 = vpop.permute.xlu0 %581
        %583 = vrot.lane.b32.xlu0 %v472, 113
        %v584 = vpop.permute.xlu0 %583
        %v585 = vsel %vm237, %v578, %v580
        %v586 = vsel %vm237, %v582, %v584
        %v593 = vsel %vm237, %v580, %v578
        %v594 = vsel %vm237, %v584, %v582
        %595 = vrot.lane.b32.xlu0 %v470, 1
        %v596 = vpop.permute.xlu0 %595
        %597 = vrot.lane.b32.xlu0 %v472, 1
        %v598 = vpop.permute.xlu0 %597
        %601 = vrot.lane.b32.xlu0 %v469, 1
        %v602 = vpop.permute.xlu0 %601
        %603 = vrot.lane.b32.xlu0 %v471, 1
        %v604 = vpop.permute.xlu0 %603
        %v605 = vsel %vm248, %v602, %v596
        %v606 = vsel %vm248, %v604, %v598
        %v611 = vsel %vm248, %v596, %v602
        %v612 = vsel %vm248, %v598, %v604
        %v613 = vsel %vm255, %v585, %v611
        %v614 = vsel %vm256, %v593, %v605
        %v615 = vsel %vm255, %v586, %v612
        %v616 = vsel %vm256, %v594, %v606
        %617 = vrot.lane.b32.xlu0 %v470, 15
        %v618 = vpop.permute.xlu0 %617
        %619 = vrot.lane.b32.xlu0 %v472, 15
        %v620 = vpop.permute.xlu0 %619
        %623 = vrot.lane.b32.xlu0 %v469, 15
        %v624 = vpop.permute.xlu0 %623
        %625 = vrot.lane.b32.xlu0 %v471, 15
        %v626 = vpop.permute.xlu0 %625
        %v627 = vsel %vm264, %v624, %v618
        %v628 = vsel %vm264, %v626, %v620
        %v633 = vsel %vm264, %v618, %v624
        %v634 = vsel %vm264, %v620, %v626
        %635 = vrot.lane.b32.xlu0 %v469, 127
        %v636 = vpop.permute.xlu0 %635
        %637 = vrot.lane.b32.xlu0 %v470, 127
        %v638 = vpop.permute.xlu0 %637
        %639 = vrot.lane.b32.xlu0 %v471, 127
        %v640 = vpop.permute.xlu0 %639
        %641 = vrot.lane.b32.xlu0 %v472, 127
        %v642 = vpop.permute.xlu0 %641
        %v643 = vsel %vm273, %v636, %v638
        %v644 = vsel %vm273, %v640, %v642
        %v651 = vsel %vm273, %v638, %v636
        %v652 = vsel %vm273, %v642, %v640
        %v653 = vsel %vm281, %v633, %v643
        %v654 = vsel %vm282, %v627, %v651
        %v655 = vsel %vm281, %v634, %v644
        %v656 = vsel %vm282, %v628, %v652
        %657 = vrot.lane.b32.xlu0 %v469, 112
        %v658 = vpop.permute.xlu0 %657
        %659 = vrot.lane.b32.xlu0 %v470, 112
        %v660 = vpop.permute.xlu0 %659
        %661 = vrot.lane.b32.xlu0 %v471, 112
        %v662 = vpop.permute.xlu0 %661
        %663 = vrot.lane.b32.xlu0 %v472, 112
        %v664 = vpop.permute.xlu0 %663
        %v665 = vsel %vm329, %v658, %v660
        %v666 = vsel %vm329, %v662, %v664
        %v673 = vsel %vm329, %v660, %v658
        %v674 = vsel %vm329, %v664, %v662
        %677 = vrot.lane.b32.xlu0 %v665, 113
        %v678 = vpop.permute.xlu0 %677
        %679 = vrot.lane.b32.xlu0 %v673, 113
        %v680 = vpop.permute.xlu0 %679
        %681 = vrot.lane.b32.xlu0 %v666, 113
        %v682 = vpop.permute.xlu0 %681
        %683 = vrot.lane.b32.xlu0 %v674, 113
        %v684 = vpop.permute.xlu0 %683
        %v685 = vsel %vm237, %v678, %v680
        %v686 = vsel %vm237, %v682, %v684
        %v693 = vsel %vm237, %v680, %v678
        %v694 = vsel %vm237, %v684, %v682
        %695 = vrot.lane.b32.xlu0 %v673, 1
        %v696 = vpop.permute.xlu0 %695
        %697 = vrot.lane.b32.xlu0 %v674, 1
        %v698 = vpop.permute.xlu0 %697
        %701 = vrot.lane.b32.xlu0 %v665, 1
        %v702 = vpop.permute.xlu0 %701
        %703 = vrot.lane.b32.xlu0 %v666, 1
        %v704 = vpop.permute.xlu0 %703
        %v705 = vsel %vm248, %v702, %v696
        %v706 = vsel %vm248, %v704, %v698
        %v711 = vsel %vm248, %v696, %v702
        %v712 = vsel %vm248, %v698, %v704
        %v713 = vsel %vm255, %v685, %v711
        %v714 = vsel %vm256, %v693, %v705
        %v715 = vsel %vm255, %v686, %v712
        %v716 = vsel %vm256, %v694, %v706
        %717 = vrot.lane.b32.xlu0 %v673, 15
        %v718 = vpop.permute.xlu0 %717
        %719 = vrot.lane.b32.xlu0 %v674, 15
        %v720 = vpop.permute.xlu0 %719
        %723 = vrot.lane.b32.xlu0 %v665, 15
        %v724 = vpop.permute.xlu0 %723
        %725 = vrot.lane.b32.xlu0 %v666, 15
        %v726 = vpop.permute.xlu0 %725
        %v727 = vsel %vm264, %v724, %v718
        %v728 = vsel %vm264, %v726, %v720
        %v733 = vsel %vm264, %v718, %v724
        %v734 = vsel %vm264, %v720, %v726
        %735 = vrot.lane.b32.xlu0 %v665, 127
        %v736 = vpop.permute.xlu0 %735
        %737 = vrot.lane.b32.xlu0 %v673, 127
        %v738 = vpop.permute.xlu0 %737
        %739 = vrot.lane.b32.xlu0 %v666, 127
        %v740 = vpop.permute.xlu0 %739
        %741 = vrot.lane.b32.xlu0 %v674, 127
        %v742 = vpop.permute.xlu0 %741
        %v743 = vsel %vm273, %v736, %v738
        %v744 = vsel %vm273, %v740, %v742
        %v751 = vsel %vm273, %v738, %v736
        %v752 = vsel %vm273, %v742, %v740
        %v753 = vsel %vm281, %v733, %v743
        %v754 = vsel %vm282, %v727, %v751
        %v755 = vsel %vm281, %v734, %v744
        %v756 = vsel %vm282, %v728, %v752
        %v757 = vpack.c.bf16 %v535, %v533
        %v758 = vpack.c.bf16 %v536, %v534
        %v759 = vpack.c.bf16 %v494, %v493
        %v760 = vpack.c.bf16 %v488, %v487
        %v761 = vpack.c.bf16 %v575, %v573
        %v762 = vpack.c.bf16 %v576, %v574
        %v763 = vpack.c.bf16 %v615, %v613
        %v764 = vpack.c.bf16 %v616, %v614
        %v765 = vpack.c.bf16 %v471, %v469
        %v766 = vpack.c.bf16 %v472, %v470
        %v767 = vpack.c.bf16 %v655, %v653
        %v768 = vpack.c.bf16 %v656, %v654
        %v769 = vpack.c.bf16 %v715, %v713
        %v770 = vpack.c.bf16 %v716, %v714
        %v771 = vpack.c.bf16 %v666, %v665
        %v772 = vpack.c.bf16 %v674, %v673
        %v773 = vpack.c.bf16 %v755, %v753
        %v774 = vpack.c.bf16 %v756, %v754
        %s775 = scalar_lea.vmem [#allocation2], 16
        %v776 = vld [vmem:[%s775] sm:$0xff]
        %777 = vset.pattern.permute.xlu0 3
        %778 = vperm.xlu0 %777, %v183
        %v779 = vpop.permute.xlu0 %778
        %v782 = vunpack.c.l.b16 %v776
        %v783 = vunpack.c.h.b16 %v776
        %v784 = vpack.c.b16 %v782, %v782
        %v785 = vpack.c.b16 %v783, %v783
        %v788 = vsel %vm227, %v785, 0
        %790 = vmatprep.subr.bf16.mxu0 %v772
        %791 = vmatpush1.bf16.msra.mxu0 %v771
        %792 = vmatprep.subr.bf16.mxu0 %v770
        %793 = vmatpush1.bf16.msra.mxu0 %v769
        %794 = vmatprep.subr.bf16.mxu0 %v768
        %795 = vmatpush1.bf16.msra.mxu0 %v767
        %796 = vmatprep.subr.bf16.mxu0 %v766
        %797 = vmatpush1.bf16.msra.mxu0 %v765
        %798 = vmatprep.subr.bf16.mxu0 %v764
        %799 = vmatpush1.bf16.msra.mxu0 %v763
        %800 = vmatprep.subr.bf16.mxu0 %v762
        %801 = vmatpush1.bf16.msra.mxu0 %v761
        %802 = vmatprep.subr.bf16.mxu0 %v760
        %803 = vmatpush1.bf16.msra.mxu0 %v759
        %804 = vmatprep.subr.bf16.mxu0 %v758
        %805 = vmatpush1.bf16.msra.mxu0 %v757
        %806 = vmatprep.subr.bf16.mxu0 0
        %807 = vmatpush2.bf16.msra.mxu0 0
        %808 = vmatprep.subr.bf16.mxu0 0
        %809 = vmatpush2.bf16.msra.mxu0 0
        %810 = vmatprep.subr.bf16.mxu0 0
        %811 = vmatpush2.bf16.msra.mxu0 0
        %812 = vmatprep.subr.bf16.mxu0 0
        %813 = vmatpush2.bf16.msra.mxu0 0
        %814 = vmatprep.subr.bf16.mxu0 0
        %815 = vmatpush2.bf16.msra.mxu0 0
        %816 = vmatprep.subr.bf16.mxu0 0
        %817 = vmatpush2.bf16.msra.mxu0 0
        %818 = vmatprep.subr.bf16.mxu0 0
        %819 = vmatpush2.bf16.msra.mxu0 0
        %820 = vmatprep.subr.bf16.mxu0 %v774
        %821 = vmatpush2.bf16.msra.mxu0 %v773
        %822 = vmatprep.mubr.bf16.mxu0 %v788
        %823 = vmatmul.mubr.bf16.gmra.mxu0 %v784
        %v824 = vpop.f32.mrf.mxu0
        %v825 = vadd.f32 %v779, %v824
        %v826 = vpop.f32.mrf.mxu0
        %v827 = vadd.f32 %v779, %v826
        %v828 = vpop.f32.mrf.mxu0
        %v829 = vpop.f32.mrf.mxu0
        %830 = vdwg.mxu0
        %vm831 = vcmp.ge.f32.partialorder %v825, 0.0
        %vm832 = vcmp.ge.f32.partialorder %v827, 0.0
        %v833 = vrot.slane %v183, 1
        %834 = vrot.lane.b32.xlu0 %v833, 122
        %v835 = vpop.permute.xlu0 %834
        %s836 = vtos %v835
        %v837 = vstv %s836
        %v839 = vmul.f32 %v837, %v825
        %v840 = vmul.f32 %v837, %v827
        %v841 = vsel %vm831, %v825, %v839
        %v842 = vsel %vm832, %v827, %v840
        %844 = vrot.lane.b32.xlu0 %v842, 16
        %v845 = vpop.permute.xlu0 %844
        %848 = vrot.lane.b32.xlu0 %v841, 16
        %v849 = vpop.permute.xlu0 %848
        %v850 = vsel %vm227, %v849, %v845
        %v853 = vsel %vm227, %v845, %v849
        %855 = vrot.lane.b32.xlu0 %v853, 113
        %v856 = vpop.permute.xlu0 %855
        %857 = vrot.lane.b32.xlu0 %v850, 113
        %v858 = vpop.permute.xlu0 %857
        %v859 = vsel %vm237, %v856, %v858
        %v863 = vsel %vm237, %v858, %v856
        %864 = vrot.lane.b32.xlu0 %v850, 1
        %v865 = vpop.permute.xlu0 %864
        %867 = vrot.lane.b32.xlu0 %v853, 1
        %v868 = vpop.permute.xlu0 %867
        %v869 = vsel %vm248, %v868, %v865
        %v872 = vsel %vm248, %v865, %v868
        %v873 = vsel %vm255, %v859, %v872
        %v874 = vsel %vm256, %v863, %v869
        %875 = vrot.lane.b32.xlu0 %v850, 15
        %v876 = vpop.permute.xlu0 %875
        %878 = vrot.lane.b32.xlu0 %v853, 15
        %v879 = vpop.permute.xlu0 %878
        %v880 = vsel %vm264, %v879, %v876
        %v883 = vsel %vm264, %v876, %v879
        %884 = vrot.lane.b32.xlu0 %v853, 127
        %v885 = vpop.permute.xlu0 %884
        %886 = vrot.lane.b32.xlu0 %v850, 127
        %v887 = vpop.permute.xlu0 %886
        %v888 = vsel %vm273, %v885, %v887
        %v892 = vsel %vm273, %v887, %v885
        %v893 = vsel %vm281, %v883, %v888
        %v894 = vsel %vm282, %v880, %v892
        %895 = vrot.lane.b32.xlu0 %v841, 113
        %v896 = vpop.permute.xlu0 %895
        %897 = vrot.lane.b32.xlu0 %v842, 113
        %v898 = vpop.permute.xlu0 %897
        %v899 = vsel %vm237, %v896, %v898
        %v903 = vsel %vm237, %v898, %v896
        %904 = vrot.lane.b32.xlu0 %v842, 1
        %v905 = vpop.permute.xlu0 %904
        %907 = vrot.lane.b32.xlu0 %v841, 1
        %v908 = vpop.permute.xlu0 %907
        %v909 = vsel %vm248, %v908, %v905
        %v912 = vsel %vm248, %v905, %v908
        %v913 = vsel %vm255, %v899, %v912
        %v914 = vsel %vm256, %v903, %v909
        %915 = vrot.lane.b32.xlu0 %v842, 15
        %v916 = vpop.permute.xlu0 %915
        %918 = vrot.lane.b32.xlu0 %v841, 15
        %v919 = vpop.permute.xlu0 %918
        %v920 = vsel %vm264, %v919, %v916
        %v923 = vsel %vm264, %v916, %v919
        %924 = vrot.lane.b32.xlu0 %v841, 127
        %v925 = vpop.permute.xlu0 %924
        %926 = vrot.lane.b32.xlu0 %v842, 127
        %v927 = vpop.permute.xlu0 %926
        %v928 = vsel %vm273, %v925, %v927
        %v932 = vsel %vm273, %v927, %v925
        %v933 = vsel %vm281, %v923, %v928
        %v934 = vsel %vm282, %v920, %v932
        %935 = vrot.lane.b32.xlu0 %v841, 112
        %v936 = vpop.permute.xlu0 %935
        %937 = vrot.lane.b32.xlu0 %v842, 112
        %v938 = vpop.permute.xlu0 %937
        %v939 = vsel %vm329, %v936, %v938
        %v943 = vsel %vm329, %v938, %v936
        %945 = vrot.lane.b32.xlu0 %v939, 113
        %v946 = vpop.permute.xlu0 %945
        %947 = vrot.lane.b32.xlu0 %v943, 113
        %v948 = vpop.permute.xlu0 %947
        %v949 = vsel %vm237, %v946, %v948
        %v953 = vsel %vm237, %v948, %v946
        %954 = vrot.lane.b32.xlu0 %v943, 1
        %v955 = vpop.permute.xlu0 %954
        %957 = vrot.lane.b32.xlu0 %v939, 1
        %v958 = vpop.permute.xlu0 %957
        %v959 = vsel %vm248, %v958, %v955
        %v962 = vsel %vm248, %v955, %v958
        %v963 = vsel %vm255, %v949, %v962
        %v964 = vsel %vm256, %v953, %v959
        %965 = vrot.lane.b32.xlu0 %v943, 15
        %v966 = vpop.permute.xlu0 %965
        %968 = vrot.lane.b32.xlu0 %v939, 15
        %v969 = vpop.permute.xlu0 %968
        %v970 = vsel %vm264, %v969, %v966
        %v973 = vsel %vm264, %v966, %v969
        %974 = vrot.lane.b32.xlu0 %v939, 127
        %v975 = vpop.permute.xlu0 %974
        %976 = vrot.lane.b32.xlu0 %v943, 127
        %v977 = vpop.permute.xlu0 %976
        %v978 = vsel %vm273, %v975, %v977
        %v982 = vsel %vm273, %v977, %v975
        %v983 = vsel %vm281, %v973, %v978
        %v984 = vsel %vm282, %v970, %v982
        %v985 = vpack.c.bf16 %v853, %v873
        %v986 = vpack.c.bf16 %v850, %v874
        %v987 = vpack.c.bf16 %v913, %v893
        %v988 = vpack.c.bf16 %v914, %v894
        %v989 = vpack.c.bf16 %v933, %v841
        %v990 = vpack.c.bf16 %v934, %v842
        %v991 = vpack.c.bf16 %v939, %v963
        %v992 = vpack.c.bf16 %v943, %v964
        %v993 = vpack.c.bf16 %v983, %v983
        %v994 = vpack.c.bf16 %v984, %v984
        %s995 = scalar_lea.vmem [#allocation2], 32
        %v996 = vld [vmem:[%s995] sm:$0xff]
        %997 = vset.pattern.permute.xlu0 4
        %998 = vperm.xlu0 %997, %v183
        %v999 = vpop.permute.xlu0 %998
        %v1002 = vsel %vm402, %v996, 0
        %v1005 = vsel %vm406, %v993, 0
        %v1008 = vsel %vm406, %v994, 0
        %1010 = vmatprep.subr.bf16.mxu0 0
        %1011 = vmatpush1.bf16.msra.mxu0 0
        %1012 = vmatprep.subr.bf16.mxu0 0
        %1013 = vmatpush1.bf16.msra.mxu0 0
        %1014 = vmatprep.subr.bf16.mxu0 0
        %1015 = vmatpush1.bf16.msra.mxu0 0
        %1016 = vmatprep.subr.bf16.mxu0 %v1008
        %1017 = vmatpush1.bf16.msra.mxu0 %v1005
        %1018 = vmatprep.subr.bf16.mxu0 %v992
        %1019 = vmatpush1.bf16.msra.mxu0 %v991
        %1020 = vmatprep.subr.bf16.mxu0 %v990
        %1021 = vmatpush1.bf16.msra.mxu0 %v989
        %1022 = vmatprep.subr.bf16.mxu0 %v988
        %1023 = vmatpush1.bf16.msra.mxu0 %v987
        %1024 = vmatprep.subr.bf16.mxu0 %v986
        %1025 = vmatpush1.bf16.msra.mxu0 %v985
        %1026 = vmatprep.subr.bf16.mxu0 0
        %1027 = vmatpush2.bf16.msra.mxu0 0
        %1028 = vmatprep.subr.bf16.mxu0 0
        %1029 = vmatpush2.bf16.msra.mxu0 0
        %1030 = vmatprep.subr.bf16.mxu0 0
        %1031 = vmatpush2.bf16.msra.mxu0 0
        %1032 = vmatprep.subr.bf16.mxu0 0
        %1033 = vmatpush2.bf16.msra.mxu0 0
        %1034 = vmatprep.subr.bf16.mxu0 0
        %1035 = vmatpush2.bf16.msra.mxu0 0
        %1036 = vmatprep.subr.bf16.mxu0 0
        %1037 = vmatpush2.bf16.msra.mxu0 0
        %1038 = vmatprep.subr.bf16.mxu0 0
        %1039 = vmatpush2.bf16.msra.mxu0 0
        %1040 = vmatprep.subr.bf16.mxu0 0
        %1041 = vmatpush2.bf16.msra.mxu0 0
        %1042 = vmatprep.mubr.bf16.mxu0 0
        %1043 = vmatmul.mubr.bf16.gmra.mxu0 %v1002
        %v1044 = vpop.f32.mrf.mxu0
        %v1045 = vadd.f32 %v999, %v1044
        %v1046 = vpop.f32.mrf.mxu0
        %v1047 = vadd.f32 %v999, %v1046
        %v1048 = vpop.f32.mrf.mxu0
        %v1049 = vpop.f32.mrf.mxu0
        %1050 = vdwg.mxu0
        %vm1051 = vcmp.ge.f32.partialorder %v1045, 0.0
        %vm1052 = vcmp.ge.f32.partialorder %v1047, 0.0
        %v1053 = vrot.slane %v183, 2
        %1054 = vrot.lane.b32.xlu0 %v1053, 122
        %v1055 = vpop.permute.xlu0 %1054
        %s1056 = vtos %v1055
        %v1057 = vstv %s1056
        %v1059 = vmul.f32 %v1057, %v1045
        %v1060 = vmul.f32 %v1057, %v1047
        %v1061 = vsel %vm1051, %v1045, %v1059
        %v1062 = vsel %vm1052, %v1047, %v1060
        %1064 = vrot.lane.b32.xlu0 %v1062, 16
        %v1065 = vpop.permute.xlu0 %1064
        %1068 = vrot.lane.b32.xlu0 %v1061, 16
        %v1069 = vpop.permute.xlu0 %1068
        %v1070 = vsel %vm227, %v1069, %v1065
        %v1072 = vsel %vm227, %v1065, %v1069
        %1074 = vrot.lane.b32.xlu0 %v1072, 113
        %v1075 = vpop.permute.xlu0 %1074
        %1076 = vrot.lane.b32.xlu0 %v1070, 113
        %v1077 = vpop.permute.xlu0 %1076
        %v1078 = vsel %vm237, %v1075, %v1077
        %v1082 = vsel %vm237, %v1077, %v1075
        %1083 = vrot.lane.b32.xlu0 %v1070, 1
        %v1084 = vpop.permute.xlu0 %1083
        %1086 = vrot.lane.b32.xlu0 %v1072, 1
        %v1087 = vpop.permute.xlu0 %1086
        %v1088 = vsel %vm248, %v1087, %v1084
        %v1091 = vsel %vm248, %v1084, %v1087
        %v1092 = vsel %vm255, %v1078, %v1091
        %v1093 = vsel %vm256, %v1082, %v1088
        %1094 = vrot.lane.b32.xlu0 %v1070, 15
        %v1095 = vpop.permute.xlu0 %1094
        %1097 = vrot.lane.b32.xlu0 %v1072, 15
        %v1098 = vpop.permute.xlu0 %1097
        %v1099 = vsel %vm264, %v1098, %v1095
        %v1102 = vsel %vm264, %v1095, %v1098
        %1103 = vrot.lane.b32.xlu0 %v1072, 127
        %v1104 = vpop.permute.xlu0 %1103
        %1105 = vrot.lane.b32.xlu0 %v1070, 127
        %v1106 = vpop.permute.xlu0 %1105
        %v1107 = vsel %vm273, %v1104, %v1106
        %v1111 = vsel %vm273, %v1106, %v1104
        %v1112 = vsel %vm281, %v1102, %v1107
        %v1113 = vsel %vm282, %v1099, %v1111
        %1114 = vrot.lane.b32.xlu0 %v1061, 113
        %v1115 = vpop.permute.xlu0 %1114
        %1116 = vrot.lane.b32.xlu0 %v1062, 113
        %v1117 = vpop.permute.xlu0 %1116
        %v1118 = vsel %vm237, %v1115, %v1117
        %v1122 = vsel %vm237, %v1117, %v1115
        %1123 = vrot.lane.b32.xlu0 %v1062, 1
        %v1124 = vpop.permute.xlu0 %1123
        %1126 = vrot.lane.b32.xlu0 %v1061, 1
        %v1127 = vpop.permute.xlu0 %1126
        %v1128 = vsel %vm248, %v1127, %v1124
        %v1131 = vsel %vm248, %v1124, %v1127
        %v1132 = vsel %vm255, %v1118, %v1131
        %v1133 = vsel %vm256, %v1122, %v1128
        %1134 = vrot.lane.b32.xlu0 %v1062, 15
        %v1135 = vpop.permute.xlu0 %1134
        %1137 = vrot.lane.b32.xlu0 %v1061, 15
        %v1138 = vpop.permute.xlu0 %1137
        %v1139 = vsel %vm264, %v1138, %v1135
        %v1142 = vsel %vm264, %v1135, %v1138
        %1143 = vrot.lane.b32.xlu0 %v1061, 127
        %v1144 = vpop.permute.xlu0 %1143
        %1145 = vrot.lane.b32.xlu0 %v1062, 127
        %v1146 = vpop.permute.xlu0 %1145
        %v1147 = vsel %vm273, %v1144, %v1146
        %v1151 = vsel %vm273, %v1146, %v1144
        %v1152 = vsel %vm281, %v1142, %v1147
        %v1153 = vsel %vm282, %v1139, %v1151
        %1154 = vrot.lane.b32.xlu0 %v1061, 112
        %v1155 = vpop.permute.xlu0 %1154
        %1156 = vrot.lane.b32.xlu0 %v1062, 112
        %v1157 = vpop.permute.xlu0 %1156
        %v1158 = vsel %vm329, %v1155, %v1157
        %v1161 = vsel %vm329, %v1157, %v1155
        %1163 = vrot.lane.b32.xlu0 %v1158, 113
        %v1164 = vpop.permute.xlu0 %1163
        %1165 = vrot.lane.b32.xlu0 %v1161, 113
        %v1166 = vpop.permute.xlu0 %1165
        %v1167 = vsel %vm237, %v1164, %v1166
        %v1171 = vsel %vm237, %v1166, %v1164
        %1172 = vrot.lane.b32.xlu0 %v1161, 1
        %v1173 = vpop.permute.xlu0 %1172
        %1175 = vrot.lane.b32.xlu0 %v1158, 1
        %v1176 = vpop.permute.xlu0 %1175
        %v1177 = vsel %vm248, %v1176, %v1173
        %v1180 = vsel %vm248, %v1173, %v1176
        %v1181 = vsel %vm255, %v1167, %v1180
        %v1182 = vsel %vm256, %v1171, %v1177
        %1183 = vrot.lane.b32.xlu0 %v1161, 15
        %v1184 = vpop.permute.xlu0 %1183
        %1186 = vrot.lane.b32.xlu0 %v1158, 15
        %v1187 = vpop.permute.xlu0 %1186
        %v1188 = vsel %vm264, %v1187, %v1184
        %v1191 = vsel %vm264, %v1184, %v1187
        %1192 = vrot.lane.b32.xlu0 %v1158, 127
        %v1193 = vpop.permute.xlu0 %1192
        %1194 = vrot.lane.b32.xlu0 %v1161, 127
        %v1195 = vpop.permute.xlu0 %1194
        %v1196 = vsel %vm273, %v1193, %v1195
        %v1200 = vsel %vm273, %v1195, %v1193
        %v1201 = vsel %vm281, %v1191, %v1196
        %v1202 = vsel %vm282, %v1188, %v1200
        %v1203 = vrot.slane %v1072, 4
        %v1204 = vrot.slane %v1070, 4
        %v1209 = vrot.slane %v1132, 4
        %v1210 = vrot.slane %v1133, 4
        %v1215 = vrot.slane %v1152, 4
        %v1216 = vrot.slane %v1153, 4
        %v1219 = vrot.slane %v1158, 4
        %v1220 = vrot.slane %v1161, 4
        %v1223 = vsel %vm406, %v1092, %v1203
        %v1224 = vsel %vm406, %v1093, %v1204
        %v1225 = vsel %vm406, %v1112, %v1209
        %v1226 = vsel %vm406, %v1113, %v1210
        %v1227 = vsel %vm406, %v1061, %v1215
        %v1228 = vsel %vm406, %v1062, %v1216
        %v1229 = vsel %vm406, %v1181, %v1219
        %v1230 = vsel %vm406, %v1182, %v1220
        %v1231 = vpack.c.bf16 %v1225, %v1223
        %v1232 = vpack.c.bf16 %v1226, %v1224
        %v1233 = vpack.c.bf16 %v1229, %v1227
        %v1234 = vpack.c.bf16 %v1230, %v1228
        %v1235 = vpack.c.bf16 %v1201, %v1201
        %v1236 = vpack.c.bf16 %v1202, %v1202
        %s1237 = scalar_lea.vmem [#allocation2], 48
        %v1238 = vld [vmem:[%s1237] sm:$0xff]
        %1239 = vset.pattern.permute.xlu0 5
        %1240 = vperm.xlu0 %1239, %v183
        %v1241 = vpop.permute.xlu0 %1240
        %vm1243 = vcmask 293888
        %v1245 = vsel %vm1243, %v1238, 0
        %vm1247 = vcmask 1041408
        %v1249 = vsel %vm1247, %v1235, 0
        %v1252 = vsel %vm1247, %v1236, 0
        %1254 = vmatprep.subr.bf16.mxu0 0
        %1255 = vmatpush1.bf16.msra.mxu0 0
        %1256 = vmatprep.subr.bf16.mxu0 0
        %1257 = vmatpush1.bf16.msra.mxu0 0
        %1258 = vmatprep.subr.bf16.mxu0 0
        %1259 = vmatpush1.bf16.msra.mxu0 0
        %1260 = vmatprep.subr.bf16.mxu0 0
        %1261 = vmatpush1.bf16.msra.mxu0 0
        %1262 = vmatprep.subr.bf16.mxu0 0
        %1263 = vmatpush1.bf16.msra.mxu0 0
        %1264 = vmatprep.subr.bf16.mxu0 %v1252
        %1265 = vmatpush1.bf16.msra.mxu0 %v1249
        %1266 = vmatprep.subr.bf16.mxu0 %v1234
        %1267 = vmatpush1.bf16.msra.mxu0 %v1233
        %1268 = vmatprep.subr.bf16.mxu0 %v1232
        %1269 = vmatpush1.bf16.msra.mxu0 %v1231
        %1270 = vmatprep.subr.bf16.mxu0 0
        %1271 = vmatpush2.bf16.msra.mxu0 0
        %1272 = vmatprep.subr.bf16.mxu0 0
        %1273 = vmatpush2.bf16.msra.mxu0 0
        %1274 = vmatprep.subr.bf16.mxu0 0
        %1275 = vmatpush2.bf16.msra.mxu0 0
        %1276 = vmatprep.subr.bf16.mxu0 0
        %1277 = vmatpush2.bf16.msra.mxu0 0
        %1278 = vmatprep.subr.bf16.mxu0 0
        %1279 = vmatpush2.bf16.msra.mxu0 0
        %1280 = vmatprep.subr.bf16.mxu0 0
        %1281 = vmatpush2.bf16.msra.mxu0 0
        %1282 = vmatprep.subr.bf16.mxu0 0
        %1283 = vmatpush2.bf16.msra.mxu0 0
        %1284 = vmatprep.subr.bf16.mxu0 0
        %1285 = vmatpush2.bf16.msra.mxu0 0
        %1286 = vmatprep.mubr.bf16.mxu0 0
        %1287 = vmatmul.mubr.bf16.gmra.mxu0 %v1245
        %v1288 = vpop.f32.mrf.mxu0
        %v1289 = vadd.f32 %v1241, %v1288
        %v1290 = vpop.f32.mrf.mxu0
        %v1291 = vadd.f32 %v1241, %v1290
        %v1292 = vpop.f32.mrf.mxu0
        %v1293 = vpop.f32.mrf.mxu0
        %1294 = vdwg.mxu0
        %v1295 = vsub.f32 0.0, %v1289
        %v1296 = vsub.f32 0.0, %v1291
        %v1297 = vmul.f32 %v1295, 1.442695
        %v1298 = vpow.pop %v1297
        %v1299 = vmul.f32 %v1296, 1.442695
        %v1300 = vpow.pop %v1299
        %v1301 = vadd.f32 %v1298, 1.0
        %v1302 = vadd.f32 %v1300, 1.0
        %v1303 = vrcp.pop %v1301
        %v1304 = vrcp.pop %v1302
        %v1307 = vcombine.low %v1303, %v1304
        %v1309 = vunpack.c.l.s4 1966171168
        %v1310 = vunpack.c.0.s8 %v1309
        %v1311 = vlaneseq
        %v1312 = vshrl.u32 %v1311, 7
        %v1313 = vsub.s32 %v1310, %v1312
        %v1314 = vrot.slane %v1307, %v1313
        %v1316 = vunpack.c.l.s4 1966171168
        %v1317 = vunpack.c.0.s8 %v1316
        %v1318 = vlaneseq
        %v1319 = vshrl.u32 %v1318, 7
        %v1320 = vsub.s32 %v1317, %v1319
        %v1321 = vrot.slane %v1314, %v1320
        %v1323 = vlaneseq
        %vm1324 = vcmp.ge.s32.totalorder %v1323, 0
        %vm1325 = vcmp.lt.s32.totalorder %v1323, 256
        %vm1326 = vmand %vm1324, %vm1325
        %1327 = vst.msk [vmem:[%s180] sm:$0x3] %vm1326, %v1321
        %p1328 = scmp.lt.s32.totalorder %s15, 1
        %s1329 = scalar_select %p1328, %s15, 1
        %s1330 = smul.addr %s1329, 2
        %s1331 = scalar_lea.vmem %s3, %s1330
        // Predicated region
        $region37: #{relaxed_forward_net.1} parent=31 // pred_check
          %p1332 = pneg %p101
        $region38: #{relaxed_forward_net.1} parent=31 // pred_check_branch
          %1334 = sbr.rel (%p1332) target = $region40
        $region39: #{relaxed_forward_net.1} parent=31 // pred_region
          _
        $region40: #{relaxed_forward_net.1} parent=31 // pred_fallthru
          _
      $region32: #{relaxed_forward_net.1} parent=5 // pred_fallthru
        _
      %p1335 = scmp.le.s32.totalorder 2, %s10
      // Predicated region
      $region41: #{relaxed_forward_net.1} parent=5 // pred_check
        %p1336 = pneg %p1335
      $region42: #{relaxed_forward_net.1} parent=5 // pred_check_branch
        %1338 = sbr.rel (%p1336) target = $region44
      $region43: #{relaxed_forward_net.1} parent=5 // pred_region
        %s1339 = ssub.s32 %s10, 2
        // Predicated region
        $region45: #{relaxed_forward_net.1} parent=43 // pred_check
          %p1340 = pneg %p107
        $region46: #{relaxed_forward_net.1} parent=43 // pred_check_branch
          %1342 = sbr.rel (%p1340) target = $region48
        $region47: #{relaxed_forward_net.1} parent=43 // pred_region
          %p1343 = scmp.lt.s32.totalorder %s16, 1
          %s1344 = scalar_select %p1343, %s16, 1
          %s1345 = smul.addr %s1344, 2
          %s1346 = scalar_lea.vmem %s3, %s1345
        $region48: #{relaxed_forward_net.1} parent=43 // pred_fallthru
          _
      $region44: #{relaxed_forward_net.1} parent=5 // pred_fallthru
        _
    $region6: #{relaxed_forward_net.1} parent=1 // loop_footer
      %s14 = sadd.s32 1, %s10
    $region7: #{relaxed_forward_net.1} parent=1 // loop_footer_branch
      %9 = sbr.rel target = $region3
    $region8: #{relaxed_forward_net.1} parent=1 // loop_exit
      _
    %1347 = vsyncpa [#allocation3], 1
    %s1348 = scalar_lea.sflag [#allocation3], 1
    %1349 = vsyncpa %s1348, 1

</llo_original>
